<compile_context>
chip_gen: v5e
topology: v5e:2x2
jax: 0.10.0
libtpu: 0.0.40
codegen_flags: <defaults>
</compile_context>

<pallas_src>
import functools

import jax
import jax.numpy as jnp
from jax.experimental import pallas as pl
from jax.experimental.pallas import tpu as pltpu


# --------------------------------- kernel ---------------------------------------
def _random_layer_kernel(*refs, n_inputs, scale):
    """Fused RandomLayer forward on one lane tile.

    refs = (x_0, ..., x_{n-1}, R_0, ..., R_{n-1}, out)
      x_i : (B, d_i)    input i               (same block every grid step)
      R_i : (d_i, TN)   lane tile of random matrix i
      out : (B, TN)     lane tile of the output
    """
    x_refs = refs[:n_inputs]
    r_refs = refs[n_inputs:2 * n_inputs]
    out_ref = refs[2 * n_inputs]

    # (X0 @ R0) * scale, matching the PyTorch division by D**(1/N).
    acc = jnp.dot(
        x_refs[0][...], r_refs[0][...],
        preferred_element_type=jnp.float32,
        precision=jax.lax.Precision.HIGHEST,
    ) * scale
    # Elementwise products with the remaining projections (VPU; free vs MXU).
    for i in range(1, n_inputs):
        acc = acc * jnp.dot(
            x_refs[i][...], r_refs[i][...],
            preferred_element_type=jnp.float32,
            precision=jax.lax.Precision.HIGHEST,
        )
    out_ref[...] = acc.astype(out_ref.dtype)


def _pick_lane_tile(D):
    """Largest lane tile (multiple of 128, <= 2048) dividing D; else full D."""
    if D % 128 != 0 or D <= 2048:
        return D
    for tn in (2048, 1024, 512, 256, 128):
        if D % tn == 0:
            return tn
    return D


# -------------------------------- wrapper ----------------------------------------
def random_layer_forward(input_list, random_matrices):
    """Mirror of RandomLayer.forward.

    input_list[i]:       (B, d_i) float32
    random_matrices[i]:  (d_i, D) float32
    returns:             (B, D)   float32
    """
    n = len(input_list)
    assert n >= 1 and n == len(random_matrices)
    B = input_list[0].shape[0]
    D = random_matrices[0].shape[1]
    scale = 1.0 / (float(D) ** (1.0 / n))

    tn = _pick_lane_tile(D)
    grid = (D // tn,)

    # Activations: full (B, d_i) block, constant across the lane grid.
    in_specs = [
        pl.BlockSpec((B, x.shape[1]), lambda j: (0, 0)) for x in input_list
    ]
    # Random matrices: tile only the lane (output) axis.
    in_specs += [
        pl.BlockSpec((r.shape[0], tn), lambda j: (0, j)) for r in random_matrices
    ]
    out_specs = pl.BlockSpec((B, tn), lambda j: (0, j))

    kernel = functools.partial(_random_layer_kernel, n_inputs=n, scale=scale)
    return pl.pallas_call(
        kernel,
        out_shape=jax.ShapeDtypeStruct((B, D), jnp.float32),
        grid_spec=pltpu.PrefetchScalarGridSpec(
            num_scalar_prefetch=0,
            grid=grid,
            in_specs=in_specs,
            out_specs=out_specs,
        ),
        compiler_params=pltpu.CompilerParams(
            dimension_semantics=("parallel",)),
    )(*input_list, *random_matrices)


class RandomLayer:
    """JAX mirror of the PyTorch RandomLayer module (fixed random matrices)."""

    def __init__(self, input_dim_list, output_dim=1024, *, key):
        self.input_num = len(input_dim_list)
        self.output_dim = output_dim
        keys = jax.random.split(key, self.input_num)
        self.random_matrix = [
            jax.random.normal(keys[i], (input_dim_list[i], output_dim), jnp.float32)
            for i in range(self.input_num)
        ]

    def forward(self, input_list):
        return random_layer_forward(input_list, self.random_matrix)


# ------------------------ pure-JAX reference (for checking) ---------------------
def ref_random_layer(input_list, random_matrices):
    D = random_matrices[0].shape[1]
    rets = [
        jnp.dot(x, r, preferred_element_type=jnp.float32,
                precision=jax.lax.Precision.HIGHEST)
        for x, r in zip(input_list, random_matrices)
    ]
    out = rets[0] / (float(D) ** (1.0 / len(rets)))
    for s in rets[1:]:
        out = out * s
    return out


# ----------------------------------- main ---------------------------------------
if __name__ == "__main__":
    key = jax.random.PRNGKey(0)
    k_layer, kx0, kx1 = jax.random.split(key, 3)

    BATCH = 8                     # sublane-aligned batch
    INPUT_DIMS = [64, 8]          # (feature_dim, num_classes) as in CLUDA/CDAN use
    OUTPUT_DIM = 1024             # module default

    layer = RandomLayer(INPUT_DIMS, OUTPUT_DIM, key=k_layer)
    inputs = [
        jax.random.normal(kx0, (BATCH, INPUT_DIMS[0]), jnp.float32),
        jax.random.normal(kx1, (BATCH, INPUT_DIMS[1]), jnp.float32),
    ]

    out = jax.block_until_ready(layer.forward(inputs))
    ref = jax.block_until_ready(ref_random_layer(inputs, layer.random_matrix))

    assert out.shape == (BATCH, OUTPUT_DIM), out.shape
    assert jnp.allclose(out, ref, atol=1e-3, rtol=1e-3), float(
        jnp.max(jnp.abs(out - ref)))
    print("KERNEL_OK")
</pallas_src>

<mosaic_0001>
module attributes {stable_mosaic.version = 11 : i64} {
  func.func @_random_layer_kernel(%arg0: i32, %arg1: memref<8x64xf32, #tpu.memory_space<vmem>>, %arg2: memref<8x8xf32, #tpu.memory_space<vmem>>, %arg3: memref<64x1024xf32, #tpu.memory_space<vmem>>, %arg4: memref<8x1024xf32, #tpu.memory_space<vmem>>, %arg5: memref<8x1024xf32, #tpu.memory_space<vmem>>) attributes {dimension_semantics = [#tpu.dimension_semantics<parallel>], iteration_bounds = array<i64: 1>, scalar_prefetch = 0 : i64, scratch_operands = 0 : i64, tpu.core_type = #tpu.core_type<tc>, window_params = [{pipeline_mode = #tpu.pipeline_mode<synchronous>, transform_indices = @transform_0, window_bounds = array<i64: 8, 64>}, {pipeline_mode = #tpu.pipeline_mode<synchronous>, transform_indices = @transform_1, window_bounds = array<i64: 8, 8>}, {transform_indices = @transform_2, window_bounds = array<i64: 64, 1024>}, {transform_indices = @transform_3, window_bounds = array<i64: 8, 1024>}, {transform_indices = @transform_4, window_bounds = array<i64: 8, 1024>}]} {
    %c0 = arith.constant 0 : index
    %c0_0 = arith.constant 0 : index
    %0 = vector.load %arg1[%c0, %c0_0] : memref<8x64xf32, #tpu.memory_space<vmem>>, vector<8x64xf32>
    %c0_1 = arith.constant 0 : index
    %c0_2 = arith.constant 0 : index
    %1 = vector.load %arg3[%c0_1, %c0_2] : memref<64x1024xf32, #tpu.memory_space<vmem>>, vector<64x1024xf32>
    %cst = arith.constant dense<0.000000e+00> : vector<8x1024xf32>
    %2 = tpu.matmul %0, %1, %cst {dimension_numbers = #tpu.dot_dimension_numbers<[1], [0], [0], [1], [0, 0, 1, 1], [], []>, precision = #tpu.contract_precision<fp32>} : vector<8x64xf32>, vector<64x1024xf32>, vector<8x1024xf32> -> vector<8x1024xf32>
    %cst_3 = arith.constant 3.125000e-02 : f32
    %3 = vector.broadcast %cst_3 : f32 to vector<8x1024xf32>
    %4 = arith.mulf %2, %3 : vector<8x1024xf32>
    %c0_4 = arith.constant 0 : index
    %c0_5 = arith.constant 0 : index
    %5 = vector.load %arg2[%c0_4, %c0_5] : memref<8x8xf32, #tpu.memory_space<vmem>>, vector<8x8xf32>
    %c0_6 = arith.constant 0 : index
    %c0_7 = arith.constant 0 : index
    %6 = vector.load %arg4[%c0_6, %c0_7] : memref<8x1024xf32, #tpu.memory_space<vmem>>, vector<8x1024xf32>
    %cst_8 = arith.constant dense<0.000000e+00> : vector<8x1024xf32>
    %7 = tpu.matmul %5, %6, %cst_8 {dimension_numbers = #tpu.dot_dimension_numbers<[1], [0], [0], [1], [0, 0, 1, 1], [], []>, precision = #tpu.contract_precision<fp32>} : vector<8x8xf32>, vector<8x1024xf32>, vector<8x1024xf32> -> vector<8x1024xf32>
    %8 = arith.mulf %4, %7 : vector<8x1024xf32>
    %c0_9 = arith.constant 0 : index
    %c0_10 = arith.constant 0 : index
    %9 = vector.load %arg5[%c0_9, %c0_10] : memref<8x1024xf32, #tpu.memory_space<vmem>>, vector<8x1024xf32>
    tpu.vector_store %arg5[%c0_9, %c0_10], %8 {strides = array<i32>} : memref<8x1024xf32, #tpu.memory_space<vmem>>, vector<8x1024xf32>,
    return
  }
  func.func @transform_0(%arg0: i32) -> (i32, i32) {
    %c0_i32 = arith.constant 0 : i32
    %c0_i32_0 = arith.constant 0 : i32
    %c0_i32_1 = arith.constant 0 : i32
    return %c0_i32, %c0_i32_0 : i32, i32
  }
  func.func @transform_1(%arg0: i32) -> (i32, i32) {
    %c0_i32 = arith.constant 0 : i32
    %c0_i32_0 = arith.constant 0 : i32
    %c0_i32_1 = arith.constant 0 : i32
    return %c0_i32, %c0_i32_0 : i32, i32
  }
  func.func @transform_2(%arg0: i32) -> (i32, i32) {
    %c0_i32 = arith.constant 0 : i32
    %c0_i32_0 = arith.constant 0 : i32
    return %c0_i32, %arg0 : i32, i32
  }
  func.func @transform_3(%arg0: i32) -> (i32, i32) {
    %c0_i32 = arith.constant 0 : i32
    %c0_i32_0 = arith.constant 0 : i32
    return %c0_i32, %arg0 : i32, i32
  }
  func.func @transform_4(%arg0: i32) -> (i32, i32) {
    %c0_i32 = arith.constant 0 : i32
    %c0_i32_0 = arith.constant 0 : i32
    return %c0_i32, %arg0 : i32, i32
  }
}

</mosaic_0001>

<llo_original>
// kernel: tpu_custom_call.1
$region0: #{tpu_custom_call.1}
  #allocation0 [shape = 'u32[]', space=smem, size = 0x4, offset = 0x4, fixed_abs, tag = 'smem constant byte address 0x4 - core index']
  #allocation1 [shape = 'u32[72,128]{1,0:T(1,128)}', space=vmem, size = 0x9000, scoped, tag = 'internal scratch']
  %s0 = inlined_call_operand.hbm [shape: f32[8,64], index: 0, kind: input, shape index: {}]
  %s1 = inlined_call_operand.hbm [shape: f32[8,8], index: 1, kind: input, shape index: {}]
  %s2 = inlined_call_operand.hbm [shape: f32[64,1024], index: 2, kind: input, shape index: {}]
  %s3 = inlined_call_operand.hbm [shape: f32[8,1024], index: 3, kind: input, shape index: {}]
  %s4 = inlined_call_operand.hbm [shape: f32[8,1024], index: 4, kind: output, shape index: {}]
  %s5 = sld [smem:[#allocation0]]
  $region42: #{tpu_custom_call.1} parent=0
    _
  %s7 = ssub.s32 1, %s5
  %s8 = scalar_select 0, %s7, %s5
  $region1: #{tpu_custom_call.1} parent=0
    #allocation2 [shape = 'u8[4096]{0}', space=vmem, size = 0x1000, scoped, tag = 'input window, operand 0, single buffered']
    #allocation3 [shape = 's32[1]{0}', space=sflag, size = 0x4, scoped, tag = 'scoped memory for tpu_custom_call.1']
    #allocation4 [shape = 's32[1]{0}', space=sflag, size = 0x4, scoped, tag = 'scoped memory for tpu_custom_call.1']
    #allocation5 [shape = 'u8[4096]{0}', space=vmem, size = 0x1000, scoped, tag = 'input window, operand 1, single buffered']
    #allocation6 [shape = 's32[1]{0}', space=sflag, size = 0x4, scoped, tag = 'scoped memory for tpu_custom_call.1']
    #allocation7 [shape = 'u8[262144]{0}', space=vmem, size = 0x40000, scoped, tag = 'input window, operand 2, single buffered']
    #allocation8 [shape = 'u8[32768]{0}', space=vmem, size = 0x8000, scoped, tag = 'input window, operand 3, single buffered']
    #allocation9 [shape = 's32[1]{0}', space=sflag, size = 0x4, scoped, tag = 'scoped memory for tpu_custom_call.1']
    #allocation10 [shape = 'u8[32768]{0}', space=vmem, size = 0x8000, scoped, tag = 'output window, operand 0, single buffered']
    %9 = vsyncpa [#allocation3], 0
    %10 = vsyncpa [#allocation6], 0
    %11 = vsyncpa [#allocation9], 0
    %12 = vsyncpa [#allocation4], 0
    // Predicated region
    $region2: #{tpu_custom_call.1} parent=1 // pred_check
      _
    $region3: #{tpu_custom_call.1} parent=1 // pred_check_branch
      %14 = sbr.rel (0) target = $region5
    $region4: #{tpu_custom_call.1} parent=1 // pred_region
      %16 = vsyncadd [#allocation3], 0
      %s18 = sshll.u32 %s0, 4
      %s19 = int_to_ptr.hbm [resolvable:$true] %s18
      %s20 = sshll.u32 [#allocation2], 4
      %s21 = int_to_ptr.vmem [resolvable:$true] %s20
      %23 = dma.hbm_to_vmem [thread:$0]  %s19, 128, %s21, [#allocation3]
    $region5: #{tpu_custom_call.1} parent=1 // pred_fallthru
      _
    // Predicated region
    $region6: #{tpu_custom_call.1} parent=1 // pred_check
      _
    $region7: #{tpu_custom_call.1} parent=1 // pred_check_branch
      %25 = sbr.rel (0) target = $region9
    $region8: #{tpu_custom_call.1} parent=1 // pred_region
      %27 = vsyncadd [#allocation6], 0
      %s29 = sshll.u32 %s1, 4
      %s30 = int_to_ptr.hbm [resolvable:$true] %s29
      %s31 = sshll.u32 [#allocation5], 4
      %s32 = int_to_ptr.vmem [resolvable:$true] %s31
      %34 = dma.hbm_to_vmem [thread:$0]  %s30, 128, %s32, [#allocation6]
    $region9: #{tpu_custom_call.1} parent=1 // pred_fallthru
      _
    // Predicated region
    $region10: #{tpu_custom_call.1} parent=1 // pred_check
      _
    $region11: #{tpu_custom_call.1} parent=1 // pred_check_branch
      %36 = sbr.rel (0) target = $region13
    $region12: #{tpu_custom_call.1} parent=1 // pred_region
      %38 = vsyncadd [#allocation6], 0
      %s39 = sshll.u32 %s2, 4
      %s40 = int_to_ptr.hbm [resolvable:$true] %s39
      %s41 = sshll.u32 [#allocation7], 4
      %s42 = int_to_ptr.vmem [resolvable:$true] %s41
      %47 = dma.hbm_to_vmem [thread:$0]  %s40, 8192, %s42, [#allocation6], 1024, 1024, 64
    $region13: #{tpu_custom_call.1} parent=1 // pred_fallthru
      _
    // Predicated region
    $region14: #{tpu_custom_call.1} parent=1 // pred_check
      _
    $region15: #{tpu_custom_call.1} parent=1 // pred_check_branch
      %49 = sbr.rel (0) target = $region17
    $region16: #{tpu_custom_call.1} parent=1 // pred_region
      %51 = vsyncadd [#allocation9], 0
      %s53 = sshll.u32 %s3, 4
      %s54 = int_to_ptr.hbm [resolvable:$true] %s53
      %s55 = sshll.u32 [#allocation8], 4
      %s56 = int_to_ptr.vmem [resolvable:$true] %s55
      %58 = dma.hbm_to_vmem [thread:$0]  %s54, 1024, %s56, [#allocation9]
    $region17: #{tpu_custom_call.1} parent=1 // pred_fallthru
      _
    // Predicated region
    $region18: #{tpu_custom_call.1} parent=1 // pred_check
      _
    $region19: #{tpu_custom_call.1} parent=1 // pred_check_branch
      %60 = sbr.rel (0) target = $region21
    $region20: #{tpu_custom_call.1} parent=1 // pred_region
      %62 = dma.done [#allocation3], 128
    $region21: #{tpu_custom_call.1} parent=1 // pred_fallthru
      _
    // Predicated region
    $region22: #{tpu_custom_call.1} parent=1 // pred_check
      _
    $region23: #{tpu_custom_call.1} parent=1 // pred_check_branch
      %64 = sbr.rel (0) target = $region25
    $region24: #{tpu_custom_call.1} parent=1 // pred_region
      %66 = dma.done [#allocation6], 128
    $region25: #{tpu_custom_call.1} parent=1 // pred_fallthru
      _
    // Predicated region
    $region26: #{tpu_custom_call.1} parent=1 // pred_check
      _
    $region27: #{tpu_custom_call.1} parent=1 // pred_check_branch
      %68 = sbr.rel (0) target = $region29
    $region28: #{tpu_custom_call.1} parent=1 // pred_region
      %70 = dma.done [#allocation6], 8192
    $region29: #{tpu_custom_call.1} parent=1 // pred_fallthru
      _
    // Predicated region
    $region30: #{tpu_custom_call.1} parent=1 // pred_check
      _
    $region31: #{tpu_custom_call.1} parent=1 // pred_check_branch
      %72 = sbr.rel (0) target = $region33
    $region32: #{tpu_custom_call.1} parent=1 // pred_region
      %74 = dma.done [#allocation9], 1024
    $region33: #{tpu_custom_call.1} parent=1 // pred_fallthru
      _
    %v75 = vld [vmem:[#allocation2] sm:$0xff]
    %v76 = vld [vmem:[#allocation7] sm:$0xff]
    %v77 = vld [vmem:[#allocation7 + $0x8] sm:$0xff]
    %v78 = vld [vmem:[#allocation7 + $0x10] sm:$0xff]
    %v79 = vld [vmem:[#allocation7 + $0x18] sm:$0xff]
    %v80 = vld [vmem:[#allocation7 + $0x20] sm:$0xff]
    %v81 = vld [vmem:[#allocation7 + $0x28] sm:$0xff]
    %v82 = vld [vmem:[#allocation7 + $0x30] sm:$0xff]
    %v83 = vld [vmem:[#allocation7 + $0x38] sm:$0xff]
    %v84 = vld [vmem:[#allocation7 + $0x40] sm:$0xff]
    %v85 = vld [vmem:[#allocation7 + $0x48] sm:$0xff]
    %v86 = vld [vmem:[#allocation7 + $0x50] sm:$0xff]
    %v87 = vld [vmem:[#allocation7 + $0x58] sm:$0xff]
    %v88 = vld [vmem:[#allocation7 + $0x60] sm:$0xff]
    %v89 = vld [vmem:[#allocation7 + $0x68] sm:$0xff]
    %v90 = vld [vmem:[#allocation7 + $0x70] sm:$0xff]
    %v91 = vld [vmem:[#allocation7 + $0x78] sm:$0xff]
    %v92 = vld [vmem:[#allocation7 + $0x80] sm:$0xff]
    %v93 = vld [vmem:[#allocation7 + $0x88] sm:$0xff]
    %v94 = vld [vmem:[#allocation7 + $0x90] sm:$0xff]
    %v95 = vld [vmem:[#allocation7 + $0x98] sm:$0xff]
    %v96 = vld [vmem:[#allocation7 + $0xa0] sm:$0xff]
    %v97 = vld [vmem:[#allocation7 + $0xa8] sm:$0xff]
    %v98 = vld [vmem:[#allocation7 + $0xb0] sm:$0xff]
    %v99 = vld [vmem:[#allocation7 + $0xb8] sm:$0xff]
    %v100 = vld [vmem:[#allocation7 + $0xc0] sm:$0xff]
    %v101 = vld [vmem:[#allocation7 + $0xc8] sm:$0xff]
    %v102 = vld [vmem:[#allocation7 + $0xd0] sm:$0xff]
    %v103 = vld [vmem:[#allocation7 + $0xd8] sm:$0xff]
    %v104 = vld [vmem:[#allocation7 + $0xe0] sm:$0xff]
    %v105 = vld [vmem:[#allocation7 + $0xe8] sm:$0xff]
    %v106 = vld [vmem:[#allocation7 + $0xf0] sm:$0xff]
    %v107 = vld [vmem:[#allocation7 + $0xf8] sm:$0xff]
    %v108 = vld [vmem:[#allocation7 + $0x100] sm:$0xff]
    %v109 = vld [vmem:[#allocation7 + $0x108] sm:$0xff]
    %v110 = vld [vmem:[#allocation7 + $0x110] sm:$0xff]
    %v111 = vld [vmem:[#allocation7 + $0x118] sm:$0xff]
    %v112 = vld [vmem:[#allocation7 + $0x120] sm:$0xff]
    %v113 = vld [vmem:[#allocation7 + $0x128] sm:$0xff]
    %v114 = vld [vmem:[#allocation7 + $0x130] sm:$0xff]
    %v115 = vld [vmem:[#allocation7 + $0x138] sm:$0xff]
    %v116 = vld [vmem:[#allocation7 + $0x140] sm:$0xff]
    %v117 = vld [vmem:[#allocation7 + $0x148] sm:$0xff]
    %v118 = vld [vmem:[#allocation7 + $0x150] sm:$0xff]
    %v119 = vld [vmem:[#allocation7 + $0x158] sm:$0xff]
    %v120 = vld [vmem:[#allocation7 + $0x160] sm:$0xff]
    %v121 = vld [vmem:[#allocation7 + $0x168] sm:$0xff]
    %v122 = vld [vmem:[#allocation7 + $0x170] sm:$0xff]
    %v123 = vld [vmem:[#allocation7 + $0x178] sm:$0xff]
    %v124 = vld [vmem:[#allocation7 + $0x180] sm:$0xff]
    %v125 = vld [vmem:[#allocation7 + $0x188] sm:$0xff]
    %v126 = vld [vmem:[#allocation7 + $0x190] sm:$0xff]
    %v127 = vld [vmem:[#allocation7 + $0x198] sm:$0xff]
    %v128 = vld [vmem:[#allocation7 + $0x1a0] sm:$0xff]
    %v129 = vld [vmem:[#allocation7 + $0x1a8] sm:$0xff]
    %v130 = vld [vmem:[#allocation7 + $0x1b0] sm:$0xff]
    %v131 = vld [vmem:[#allocation7 + $0x1b8] sm:$0xff]
    %v132 = vld [vmem:[#allocation7 + $0x1c0] sm:$0xff]
    %v133 = vld [vmem:[#allocation7 + $0x1c8] sm:$0xff]
    %v134 = vld [vmem:[#allocation7 + $0x1d0] sm:$0xff]
    %v135 = vld [vmem:[#allocation7 + $0x1d8] sm:$0xff]
    %v136 = vld [vmem:[#allocation7 + $0x1e0] sm:$0xff]
    %v137 = vld [vmem:[#allocation7 + $0x1e8] sm:$0xff]
    %v138 = vld [vmem:[#allocation7 + $0x1f0] sm:$0xff]
    %v139 = vld [vmem:[#allocation7 + $0x1f8] sm:$0xff]
    %vm140 = vcmask 523264
    %v142 = vsel %vm140, %v75, 0
    %144 = vmatpush.msra.mxu0 0.0
    %145 = vmatpush.msra.mxu0 0.0
    %146 = vmatpush.msra.mxu0 0.0
    %147 = vmatpush.msra.mxu0 0.0
    %148 = vmatpush.msra.mxu0 0.0
    %149 = vmatpush.msra.mxu0 0.0
    %150 = vmatpush.msra.mxu0 0.0
    %151 = vmatpush.msra.mxu0 0.0
    %v152 = vand.u32 %v132, 4294901760
    %153 = vmatpush.msra.mxu0 %v152
    %v154 = vand.u32 %v124, 4294901760
    %155 = vmatpush.msra.mxu0 %v154
    %v156 = vand.u32 %v116, 4294901760
    %157 = vmatpush.msra.mxu0 %v156
    %v158 = vand.u32 %v108, 4294901760
    %159 = vmatpush.msra.mxu0 %v158
    %v160 = vand.u32 %v100, 4294901760
    %161 = vmatpush.msra.mxu0 %v160
    %v162 = vand.u32 %v92, 4294901760
    %163 = vmatpush.msra.mxu0 %v162
    %v164 = vand.u32 %v84, 4294901760
    %165 = vmatpush.msra.mxu0 %v164
    %v166 = vand.u32 %v76, 4294901760
    %167 = vmatpush.msra.mxu0 %v166
    %v168 = vand.u32 %v142, 4294901760
    %v169 = vsub.f32 %v142, %v168
    %v170 = vand.u32 %v169, 4294901760
    %v171 = vsub.f32 %v169, %v170
    %v172 = vand.u32 %v171, 4294901760
    %173 = vmatmul.f32.gmra.mxu0 %v172
    %v174 = vpop.f32.mrf.mxu0
    %v175 = vadd.f32 0.0, %v174
    %176 = vdwg.mxu0
    %177 = vmatpush.msra.mxu0 0.0
    %178 = vmatpush.msra.mxu0 0.0
    %179 = vmatpush.msra.mxu0 0.0
    %180 = vmatpush.msra.mxu0 0.0
    %181 = vmatpush.msra.mxu0 0.0
    %182 = vmatpush.msra.mxu0 0.0
    %183 = vmatpush.msra.mxu0 0.0
    %184 = vmatpush.msra.mxu0 0.0
    %v185 = vand.u32 %v132, 4294901760
    %v186 = vsub.f32 %v132, %v185
    %v187 = vand.u32 %v186, 4294901760
    %v188 = vsub.f32 %v186, %v187
    %v189 = vand.u32 %v188, 4294901760
    %190 = vmatpush.msra.mxu0 %v189
    %v191 = vand.u32 %v124, 4294901760
    %v192 = vsub.f32 %v124, %v191
    %v193 = vand.u32 %v192, 4294901760
    %v194 = vsub.f32 %v192, %v193
    %v195 = vand.u32 %v194, 4294901760
    %196 = vmatpush.msra.mxu0 %v195
    %v197 = vand.u32 %v116, 4294901760
    %v198 = vsub.f32 %v116, %v197
    %v199 = vand.u32 %v198, 4294901760
    %v200 = vsub.f32 %v198, %v199
    %v201 = vand.u32 %v200, 4294901760
    %202 = vmatpush.msra.mxu0 %v201
    %v203 = vand.u32 %v108, 4294901760
    %v204 = vsub.f32 %v108, %v203
    %v205 = vand.u32 %v204, 4294901760
    %v206 = vsub.f32 %v204, %v205
    %v207 = vand.u32 %v206, 4294901760
    %208 = vmatpush.msra.mxu0 %v207
    %v209 = vand.u32 %v100, 4294901760
    %v210 = vsub.f32 %v100, %v209
    %v211 = vand.u32 %v210, 4294901760
    %v212 = vsub.f32 %v210, %v211
    %v213 = vand.u32 %v212, 4294901760
    %214 = vmatpush.msra.mxu0 %v213
    %v215 = vand.u32 %v92, 4294901760
    %v216 = vsub.f32 %v92, %v215
    %v217 = vand.u32 %v216, 4294901760
    %v218 = vsub.f32 %v216, %v217
    %v219 = vand.u32 %v218, 4294901760
    %220 = vmatpush.msra.mxu0 %v219
    %v221 = vand.u32 %v84, 4294901760
    %v222 = vsub.f32 %v84, %v221
    %v223 = vand.u32 %v222, 4294901760
    %v224 = vsub.f32 %v222, %v223
    %v225 = vand.u32 %v224, 4294901760
    %226 = vmatpush.msra.mxu0 %v225
    %v227 = vand.u32 %v76, 4294901760
    %v228 = vsub.f32 %v76, %v227
    %v229 = vand.u32 %v228, 4294901760
    %v230 = vsub.f32 %v228, %v229
    %v231 = vand.u32 %v230, 4294901760
    %232 = vmatpush.msra.mxu0 %v231
    %v233 = vand.u32 %v142, 4294901760
    %234 = vmatmul.f32.gmra.mxu0 %v233
    %v235 = vpop.f32.mrf.mxu0
    %v236 = vadd.f32 %v175, %v235
    %237 = vdwg.mxu0
    %238 = vmatpush.msra.mxu0 0.0
    %239 = vmatpush.msra.mxu0 0.0
    %240 = vmatpush.msra.mxu0 0.0
    %241 = vmatpush.msra.mxu0 0.0
    %242 = vmatpush.msra.mxu0 0.0
    %243 = vmatpush.msra.mxu0 0.0
    %244 = vmatpush.msra.mxu0 0.0
    %245 = vmatpush.msra.mxu0 0.0
    %v246 = vand.u32 %v132, 4294901760
    %v247 = vsub.f32 %v132, %v246
    %248 = vmatpush.msra.mxu0 %v247
    %v249 = vand.u32 %v124, 4294901760
    %v250 = vsub.f32 %v124, %v249
    %251 = vmatpush.msra.mxu0 %v250
    %v252 = vand.u32 %v116, 4294901760
    %v253 = vsub.f32 %v116, %v252
    %254 = vmatpush.msra.mxu0 %v253
    %v255 = vand.u32 %v108, 4294901760
    %v256 = vsub.f32 %v108, %v255
    %257 = vmatpush.msra.mxu0 %v256
    %v258 = vand.u32 %v100, 4294901760
    %v259 = vsub.f32 %v100, %v258
    %260 = vmatpush.msra.mxu0 %v259
    %v261 = vand.u32 %v92, 4294901760
    %v262 = vsub.f32 %v92, %v261
    %263 = vmatpush.msra.mxu0 %v262
    %v264 = vand.u32 %v84, 4294901760
    %v265 = vsub.f32 %v84, %v264
    %266 = vmatpush.msra.mxu0 %v265
    %v267 = vand.u32 %v76, 4294901760
    %v268 = vsub.f32 %v76, %v267
    %269 = vmatpush.msra.mxu0 %v268
    %v270 = vand.u32 %v142, 4294901760
    %v271 = vsub.f32 %v142, %v270
    %272 = vmatmul.f32.gmra.mxu0 %v271
    %v273 = vpop.f32.mrf.mxu0
    %v274 = vadd.f32 %v236, %v273
    %275 = vdwg.mxu0
    %276 = vmatpush.msra.mxu0 0.0
    %277 = vmatpush.msra.mxu0 0.0
    %278 = vmatpush.msra.mxu0 0.0
    %279 = vmatpush.msra.mxu0 0.0
    %280 = vmatpush.msra.mxu0 0.0
    %281 = vmatpush.msra.mxu0 0.0
    %282 = vmatpush.msra.mxu0 0.0
    %283 = vmatpush.msra.mxu0 0.0
    %v284 = vand.u32 %v132, 4294901760
    %285 = vmatpush.msra.mxu0 %v284
    %v286 = vand.u32 %v124, 4294901760
    %287 = vmatpush.msra.mxu0 %v286
    %v288 = vand.u32 %v116, 4294901760
    %289 = vmatpush.msra.mxu0 %v288
    %v290 = vand.u32 %v108, 4294901760
    %291 = vmatpush.msra.mxu0 %v290
    %v292 = vand.u32 %v100, 4294901760
    %293 = vmatpush.msra.mxu0 %v292
    %v294 = vand.u32 %v92, 4294901760
    %295 = vmatpush.msra.mxu0 %v294
    %v296 = vand.u32 %v84, 4294901760
    %297 = vmatpush.msra.mxu0 %v296
    %v298 = vand.u32 %v76, 4294901760
    %299 = vmatpush.msra.mxu0 %v298
    %v300 = vand.u32 %v142, 4294901760
    %v301 = vsub.f32 %v142, %v300
    %v302 = vand.u32 %v301, 4294901760
    %303 = vmatmul.f32.gmra.mxu0 %v302
    %v304 = vpop.f32.mrf.mxu0
    %v305 = vadd.f32 %v274, %v304
    %306 = vdwg.mxu0
    %307 = vmatpush.msra.mxu0 0.0
    %308 = vmatpush.msra.mxu0 0.0
    %309 = vmatpush.msra.mxu0 0.0
    %310 = vmatpush.msra.mxu0 0.0
    %311 = vmatpush.msra.mxu0 0.0
    %312 = vmatpush.msra.mxu0 0.0
    %313 = vmatpush.msra.mxu0 0.0
    %314 = vmatpush.msra.mxu0 0.0
    %v315 = vand.u32 %v132, 4294901760
    %v316 = vsub.f32 %v132, %v315
    %v317 = vand.u32 %v316, 4294901760
    %318 = vmatpush.msra.mxu0 %v317
    %v319 = vand.u32 %v124, 4294901760
    %v320 = vsub.f32 %v124, %v319
    %v321 = vand.u32 %v320, 4294901760
    %322 = vmatpush.msra.mxu0 %v321
    %v323 = vand.u32 %v116, 4294901760
    %v324 = vsub.f32 %v116, %v323
    %v325 = vand.u32 %v324, 4294901760
    %326 = vmatpush.msra.mxu0 %v325
    %v327 = vand.u32 %v108, 4294901760
    %v328 = vsub.f32 %v108, %v327
    %v329 = vand.u32 %v328, 4294901760
    %330 = vmatpush.msra.mxu0 %v329
    %v331 = vand.u32 %v100, 4294901760
    %v332 = vsub.f32 %v100, %v331
    %v333 = vand.u32 %v332, 4294901760
    %334 = vmatpush.msra.mxu0 %v333
    %v335 = vand.u32 %v92, 4294901760
    %v336 = vsub.f32 %v92, %v335
    %v337 = vand.u32 %v336, 4294901760
    %338 = vmatpush.msra.mxu0 %v337
    %v339 = vand.u32 %v84, 4294901760
    %v340 = vsub.f32 %v84, %v339
    %v341 = vand.u32 %v340, 4294901760
    %342 = vmatpush.msra.mxu0 %v341
    %v343 = vand.u32 %v76, 4294901760
    %v344 = vsub.f32 %v76, %v343
    %v345 = vand.u32 %v344, 4294901760
    %346 = vmatpush.msra.mxu0 %v345
    %v347 = vand.u32 %v142, 4294901760
    %348 = vmatmul.f32.gmra.mxu0 %v347
    %v349 = vpop.f32.mrf.mxu0
    %v350 = vadd.f32 %v305, %v349
    %351 = vdwg.mxu0
    %352 = vmatpush.msra.mxu0 0.0
    %353 = vmatpush.msra.mxu0 0.0
    %354 = vmatpush.msra.mxu0 0.0
    %355 = vmatpush.msra.mxu0 0.0
    %356 = vmatpush.msra.mxu0 0.0
    %357 = vmatpush.msra.mxu0 0.0
    %358 = vmatpush.msra.mxu0 0.0
    %359 = vmatpush.msra.mxu0 0.0
    %v360 = vand.u32 %v132, 4294901760
    %361 = vmatpush.msra.mxu0 %v360
    %v362 = vand.u32 %v124, 4294901760
    %363 = vmatpush.msra.mxu0 %v362
    %v364 = vand.u32 %v116, 4294901760
    %365 = vmatpush.msra.mxu0 %v364
    %v366 = vand.u32 %v108, 4294901760
    %367 = vmatpush.msra.mxu0 %v366
    %v368 = vand.u32 %v100, 4294901760
    %369 = vmatpush.msra.mxu0 %v368
    %v370 = vand.u32 %v92, 4294901760
    %371 = vmatpush.msra.mxu0 %v370
    %v372 = vand.u32 %v84, 4294901760
    %373 = vmatpush.msra.mxu0 %v372
    %v374 = vand.u32 %v76, 4294901760
    %375 = vmatpush.msra.mxu0 %v374
    %v376 = vand.u32 %v142, 4294901760
    %377 = vmatmul.f32.gmra.mxu0 %v376
    %v378 = vpop.f32.mrf.mxu0
    %v379 = vadd.f32 %v350, %v378
    %380 = vdwg.mxu0
    %381 = vmatpush.msra.mxu0 0.0
    %382 = vmatpush.msra.mxu0 0.0
    %383 = vmatpush.msra.mxu0 0.0
    %384 = vmatpush.msra.mxu0 0.0
    %385 = vmatpush.msra.mxu0 0.0
    %386 = vmatpush.msra.mxu0 0.0
    %387 = vmatpush.msra.mxu0 0.0
    %388 = vmatpush.msra.mxu0 0.0
    %v389 = vand.u32 %v133, 4294901760
    %390 = vmatpush.msra.mxu0 %v389
    %v391 = vand.u32 %v125, 4294901760
    %392 = vmatpush.msra.mxu0 %v391
    %v393 = vand.u32 %v117, 4294901760
    %394 = vmatpush.msra.mxu0 %v393
    %v395 = vand.u32 %v109, 4294901760
    %396 = vmatpush.msra.mxu0 %v395
    %v397 = vand.u32 %v101, 4294901760
    %398 = vmatpush.msra.mxu0 %v397
    %v399 = vand.u32 %v93, 4294901760
    %400 = vmatpush.msra.mxu0 %v399
    %v401 = vand.u32 %v85, 4294901760
    %402 = vmatpush.msra.mxu0 %v401
    %v403 = vand.u32 %v77, 4294901760
    %404 = vmatpush.msra.mxu0 %v403
    %v405 = vand.u32 %v142, 4294901760
    %v406 = vsub.f32 %v142, %v405
    %v407 = vand.u32 %v406, 4294901760
    %v408 = vsub.f32 %v406, %v407
    %v409 = vand.u32 %v408, 4294901760
    %410 = vmatmul.f32.gmra.mxu0 %v409
    %v411 = vpop.f32.mrf.mxu0
    %v412 = vadd.f32 0.0, %v411
    %413 = vdwg.mxu0
    %414 = vmatpush.msra.mxu0 0.0
    %415 = vmatpush.msra.mxu0 0.0
    %416 = vmatpush.msra.mxu0 0.0
    %417 = vmatpush.msra.mxu0 0.0
    %418 = vmatpush.msra.mxu0 0.0
    %419 = vmatpush.msra.mxu0 0.0
    %420 = vmatpush.msra.mxu0 0.0
    %421 = vmatpush.msra.mxu0 0.0
    %v422 = vand.u32 %v133, 4294901760
    %v423 = vsub.f32 %v133, %v422
    %v424 = vand.u32 %v423, 4294901760
    %v425 = vsub.f32 %v423, %v424
    %v426 = vand.u32 %v425, 4294901760
    %427 = vmatpush.msra.mxu0 %v426
    %v428 = vand.u32 %v125, 4294901760
    %v429 = vsub.f32 %v125, %v428
    %v430 = vand.u32 %v429, 4294901760
    %v431 = vsub.f32 %v429, %v430
    %v432 = vand.u32 %v431, 4294901760
    %433 = vmatpush.msra.mxu0 %v432
    %v434 = vand.u32 %v117, 4294901760
    %v435 = vsub.f32 %v117, %v434
    %v436 = vand.u32 %v435, 4294901760
    %v437 = vsub.f32 %v435, %v436
    %v438 = vand.u32 %v437, 4294901760
    %439 = vmatpush.msra.mxu0 %v438
    %v440 = vand.u32 %v109, 4294901760
    %v441 = vsub.f32 %v109, %v440
    %v442 = vand.u32 %v441, 4294901760
    %v443 = vsub.f32 %v441, %v442
    %v444 = vand.u32 %v443, 4294901760
    %445 = vmatpush.msra.mxu0 %v444
    %v446 = vand.u32 %v101, 4294901760
    %v447 = vsub.f32 %v101, %v446
    %v448 = vand.u32 %v447, 4294901760
    %v449 = vsub.f32 %v447, %v448
    %v450 = vand.u32 %v449, 4294901760
    %451 = vmatpush.msra.mxu0 %v450
    %v452 = vand.u32 %v93, 4294901760
    %v453 = vsub.f32 %v93, %v452
    %v454 = vand.u32 %v453, 4294901760
    %v455 = vsub.f32 %v453, %v454
    %v456 = vand.u32 %v455, 4294901760
    %457 = vmatpush.msra.mxu0 %v456
    %v458 = vand.u32 %v85, 4294901760
    %v459 = vsub.f32 %v85, %v458
    %v460 = vand.u32 %v459, 4294901760
    %v461 = vsub.f32 %v459, %v460
    %v462 = vand.u32 %v461, 4294901760
    %463 = vmatpush.msra.mxu0 %v462
    %v464 = vand.u32 %v77, 4294901760
    %v465 = vsub.f32 %v77, %v464
    %v466 = vand.u32 %v465, 4294901760
    %v467 = vsub.f32 %v465, %v466
    %v468 = vand.u32 %v467, 4294901760
    %469 = vmatpush.msra.mxu0 %v468
    %v470 = vand.u32 %v142, 4294901760
    %471 = vmatmul.f32.gmra.mxu0 %v470
    %v472 = vpop.f32.mrf.mxu0
    %v473 = vadd.f32 %v412, %v472
    %474 = vdwg.mxu0
    %475 = vmatpush.msra.mxu0 0.0
    %476 = vmatpush.msra.mxu0 0.0
    %477 = vmatpush.msra.mxu0 0.0
    %478 = vmatpush.msra.mxu0 0.0
    %479 = vmatpush.msra.mxu0 0.0
    %480 = vmatpush.msra.mxu0 0.0
    %481 = vmatpush.msra.mxu0 0.0
    %482 = vmatpush.msra.mxu0 0.0
    %v483 = vand.u32 %v133, 4294901760
    %v484 = vsub.f32 %v133, %v483
    %485 = vmatpush.msra.mxu0 %v484
    %v486 = vand.u32 %v125, 4294901760
    %v487 = vsub.f32 %v125, %v486
    %488 = vmatpush.msra.mxu0 %v487
    %v489 = vand.u32 %v117, 4294901760
    %v490 = vsub.f32 %v117, %v489
    %491 = vmatpush.msra.mxu0 %v490
    %v492 = vand.u32 %v109, 4294901760
    %v493 = vsub.f32 %v109, %v492
    %494 = vmatpush.msra.mxu0 %v493
    %v495 = vand.u32 %v101, 4294901760
    %v496 = vsub.f32 %v101, %v495
    %497 = vmatpush.msra.mxu0 %v496
    %v498 = vand.u32 %v93, 4294901760
    %v499 = vsub.f32 %v93, %v498
    %500 = vmatpush.msra.mxu0 %v499
    %v501 = vand.u32 %v85, 4294901760
    %v502 = vsub.f32 %v85, %v501
    %503 = vmatpush.msra.mxu0 %v502
    %v504 = vand.u32 %v77, 4294901760
    %v505 = vsub.f32 %v77, %v504
    %506 = vmatpush.msra.mxu0 %v505
    %v507 = vand.u32 %v142, 4294901760
    %v508 = vsub.f32 %v142, %v507
    %509 = vmatmul.f32.gmra.mxu0 %v508
    %v510 = vpop.f32.mrf.mxu0
    %v511 = vadd.f32 %v473, %v510
    %512 = vdwg.mxu0
    %513 = vmatpush.msra.mxu0 0.0
    %514 = vmatpush.msra.mxu0 0.0
    %515 = vmatpush.msra.mxu0 0.0
    %516 = vmatpush.msra.mxu0 0.0
    %517 = vmatpush.msra.mxu0 0.0
    %518 = vmatpush.msra.mxu0 0.0
    %519 = vmatpush.msra.mxu0 0.0
    %520 = vmatpush.msra.mxu0 0.0
    %v521 = vand.u32 %v133, 4294901760
    %522 = vmatpush.msra.mxu0 %v521
    %v523 = vand.u32 %v125, 4294901760
    %524 = vmatpush.msra.mxu0 %v523
    %v525 = vand.u32 %v117, 4294901760
    %526 = vmatpush.msra.mxu0 %v525
    %v527 = vand.u32 %v109, 4294901760
    %528 = vmatpush.msra.mxu0 %v527
    %v529 = vand.u32 %v101, 4294901760
    %530 = vmatpush.msra.mxu0 %v529
    %v531 = vand.u32 %v93, 4294901760
    %532 = vmatpush.msra.mxu0 %v531
    %v533 = vand.u32 %v85, 4294901760
    %534 = vmatpush.msra.mxu0 %v533
    %v535 = vand.u32 %v77, 4294901760
    %536 = vmatpush.msra.mxu0 %v535
    %v537 = vand.u32 %v142, 4294901760
    %v538 = vsub.f32 %v142, %v537
    %v539 = vand.u32 %v538, 4294901760
    %540 = vmatmul.f32.gmra.mxu0 %v539
    %v541 = vpop.f32.mrf.mxu0
    %v542 = vadd.f32 %v511, %v541
    %543 = vdwg.mxu0
    %544 = vmatpush.msra.mxu0 0.0
    %545 = vmatpush.msra.mxu0 0.0
    %546 = vmatpush.msra.mxu0 0.0
    %547 = vmatpush.msra.mxu0 0.0
    %548 = vmatpush.msra.mxu0 0.0
    %549 = vmatpush.msra.mxu0 0.0
    %550 = vmatpush.msra.mxu0 0.0
    %551 = vmatpush.msra.mxu0 0.0
    %v552 = vand.u32 %v133, 4294901760
    %v553 = vsub.f32 %v133, %v552
    %v554 = vand.u32 %v553, 4294901760
    %555 = vmatpush.msra.mxu0 %v554
    %v556 = vand.u32 %v125, 4294901760
    %v557 = vsub.f32 %v125, %v556
    %v558 = vand.u32 %v557, 4294901760
    %559 = vmatpush.msra.mxu0 %v558
    %v560 = vand.u32 %v117, 4294901760
    %v561 = vsub.f32 %v117, %v560
    %v562 = vand.u32 %v561, 4294901760
    %563 = vmatpush.msra.mxu0 %v562
    %v564 = vand.u32 %v109, 4294901760
    %v565 = vsub.f32 %v109, %v564
    %v566 = vand.u32 %v565, 4294901760
    %567 = vmatpush.msra.mxu0 %v566
    %v568 = vand.u32 %v101, 4294901760
    %v569 = vsub.f32 %v101, %v568
    %v570 = vand.u32 %v569, 4294901760
    %571 = vmatpush.msra.mxu0 %v570
    %v572 = vand.u32 %v93, 4294901760
    %v573 = vsub.f32 %v93, %v572
    %v574 = vand.u32 %v573, 4294901760
    %575 = vmatpush.msra.mxu0 %v574
    %v576 = vand.u32 %v85, 4294901760
    %v577 = vsub.f32 %v85, %v576
    %v578 = vand.u32 %v577, 4294901760
    %579 = vmatpush.msra.mxu0 %v578
    %v580 = vand.u32 %v77, 4294901760
    %v581 = vsub.f32 %v77, %v580
    %v582 = vand.u32 %v581, 4294901760
    %583 = vmatpush.msra.mxu0 %v582
    %v584 = vand.u32 %v142, 4294901760
    %585 = vmatmul.f32.gmra.mxu0 %v584
    %v586 = vpop.f32.mrf.mxu0
    %v587 = vadd.f32 %v542, %v586
    %588 = vdwg.mxu0
    %589 = vmatpush.msra.mxu0 0.0
    %590 = vmatpush.msra.mxu0 0.0
    %591 = vmatpush.msra.mxu0 0.0
    %592 = vmatpush.msra.mxu0 0.0
    %593 = vmatpush.msra.mxu0 0.0
    %594 = vmatpush.msra.mxu0 0.0
    %595 = vmatpush.msra.mxu0 0.0
    %596 = vmatpush.msra.mxu0 0.0
    %v597 = vand.u32 %v133, 4294901760
    %598 = vmatpush.msra.mxu0 %v597
    %v599 = vand.u32 %v125, 4294901760
    %600 = vmatpush.msra.mxu0 %v599
    %v601 = vand.u32 %v117, 4294901760
    %602 = vmatpush.msra.mxu0 %v601
    %v603 = vand.u32 %v109, 4294901760
    %604 = vmatpush.msra.mxu0 %v603
    %v605 = vand.u32 %v101, 4294901760
    %606 = vmatpush.msra.mxu0 %v605
    %v607 = vand.u32 %v93, 4294901760
    %608 = vmatpush.msra.mxu0 %v607
    %v609 = vand.u32 %v85, 4294901760
    %610 = vmatpush.msra.mxu0 %v609
    %v611 = vand.u32 %v77, 4294901760
    %612 = vmatpush.msra.mxu0 %v611
    %v613 = vand.u32 %v142, 4294901760
    %614 = vmatmul.f32.gmra.mxu0 %v613
    %v615 = vpop.f32.mrf.mxu0
    %v616 = vadd.f32 %v587, %v615
    %617 = vdwg.mxu0
    %618 = vmatpush.msra.mxu0 0.0
    %619 = vmatpush.msra.mxu0 0.0
    %620 = vmatpush.msra.mxu0 0.0
    %621 = vmatpush.msra.mxu0 0.0
    %622 = vmatpush.msra.mxu0 0.0
    %623 = vmatpush.msra.mxu0 0.0
    %624 = vmatpush.msra.mxu0 0.0
    %625 = vmatpush.msra.mxu0 0.0
    %v626 = vand.u32 %v134, 4294901760
    %627 = vmatpush.msra.mxu0 %v626
    %v628 = vand.u32 %v126, 4294901760
    %629 = vmatpush.msra.mxu0 %v628
    %v630 = vand.u32 %v118, 4294901760
    %631 = vmatpush.msra.mxu0 %v630
    %v632 = vand.u32 %v110, 4294901760
    %633 = vmatpush.msra.mxu0 %v632
    %v634 = vand.u32 %v102, 4294901760
    %635 = vmatpush.msra.mxu0 %v634
    %v636 = vand.u32 %v94, 4294901760
    %637 = vmatpush.msra.mxu0 %v636
    %v638 = vand.u32 %v86, 4294901760
    %639 = vmatpush.msra.mxu0 %v638
    %v640 = vand.u32 %v78, 4294901760
    %641 = vmatpush.msra.mxu0 %v640
    %v642 = vand.u32 %v142, 4294901760
    %v643 = vsub.f32 %v142, %v642
    %v644 = vand.u32 %v643, 4294901760
    %v645 = vsub.f32 %v643, %v644
    %v646 = vand.u32 %v645, 4294901760
    %647 = vmatmul.f32.gmra.mxu0 %v646
    %v648 = vpop.f32.mrf.mxu0
    %v649 = vadd.f32 0.0, %v648
    %650 = vdwg.mxu0
    %651 = vmatpush.msra.mxu0 0.0
    %652 = vmatpush.msra.mxu0 0.0
    %653 = vmatpush.msra.mxu0 0.0
    %654 = vmatpush.msra.mxu0 0.0
    %655 = vmatpush.msra.mxu0 0.0
    %656 = vmatpush.msra.mxu0 0.0
    %657 = vmatpush.msra.mxu0 0.0
    %658 = vmatpush.msra.mxu0 0.0
    %v659 = vand.u32 %v134, 4294901760
    %v660 = vsub.f32 %v134, %v659
    %v661 = vand.u32 %v660, 4294901760
    %v662 = vsub.f32 %v660, %v661
    %v663 = vand.u32 %v662, 4294901760
    %664 = vmatpush.msra.mxu0 %v663
    %v665 = vand.u32 %v126, 4294901760
    %v666 = vsub.f32 %v126, %v665
    %v667 = vand.u32 %v666, 4294901760
    %v668 = vsub.f32 %v666, %v667
    %v669 = vand.u32 %v668, 4294901760
    %670 = vmatpush.msra.mxu0 %v669
    %v671 = vand.u32 %v118, 4294901760
    %v672 = vsub.f32 %v118, %v671
    %v673 = vand.u32 %v672, 4294901760
    %v674 = vsub.f32 %v672, %v673
    %v675 = vand.u32 %v674, 4294901760
    %676 = vmatpush.msra.mxu0 %v675
    %v677 = vand.u32 %v110, 4294901760
    %v678 = vsub.f32 %v110, %v677
    %v679 = vand.u32 %v678, 4294901760
    %v680 = vsub.f32 %v678, %v679
    %v681 = vand.u32 %v680, 4294901760
    %682 = vmatpush.msra.mxu0 %v681
    %v683 = vand.u32 %v102, 4294901760
    %v684 = vsub.f32 %v102, %v683
    %v685 = vand.u32 %v684, 4294901760
    %v686 = vsub.f32 %v684, %v685
    %v687 = vand.u32 %v686, 4294901760
    %688 = vmatpush.msra.mxu0 %v687
    %v689 = vand.u32 %v94, 4294901760
    %v690 = vsub.f32 %v94, %v689
    %v691 = vand.u32 %v690, 4294901760
    %v692 = vsub.f32 %v690, %v691
    %v693 = vand.u32 %v692, 4294901760
    %694 = vmatpush.msra.mxu0 %v693
    %v695 = vand.u32 %v86, 4294901760
    %v696 = vsub.f32 %v86, %v695
    %v697 = vand.u32 %v696, 4294901760
    %v698 = vsub.f32 %v696, %v697
    %v699 = vand.u32 %v698, 4294901760
    %700 = vmatpush.msra.mxu0 %v699
    %v701 = vand.u32 %v78, 4294901760
    %v702 = vsub.f32 %v78, %v701
    %v703 = vand.u32 %v702, 4294901760
    %v704 = vsub.f32 %v702, %v703
    %v705 = vand.u32 %v704, 4294901760
    %706 = vmatpush.msra.mxu0 %v705
    %v707 = vand.u32 %v142, 4294901760
    %708 = vmatmul.f32.gmra.mxu0 %v707
    %v709 = vpop.f32.mrf.mxu0
    %v710 = vadd.f32 %v649, %v709
    %711 = vdwg.mxu0
    %712 = vmatpush.msra.mxu0 0.0
    %713 = vmatpush.msra.mxu0 0.0
    %714 = vmatpush.msra.mxu0 0.0
    %715 = vmatpush.msra.mxu0 0.0
    %716 = vmatpush.msra.mxu0 0.0
    %717 = vmatpush.msra.mxu0 0.0
    %718 = vmatpush.msra.mxu0 0.0
    %719 = vmatpush.msra.mxu0 0.0
    %v720 = vand.u32 %v134, 4294901760
    %v721 = vsub.f32 %v134, %v720
    %722 = vmatpush.msra.mxu0 %v721
    %v723 = vand.u32 %v126, 4294901760
    %v724 = vsub.f32 %v126, %v723
    %725 = vmatpush.msra.mxu0 %v724
    %v726 = vand.u32 %v118, 4294901760
    %v727 = vsub.f32 %v118, %v726
    %728 = vmatpush.msra.mxu0 %v727
    %v729 = vand.u32 %v110, 4294901760
    %v730 = vsub.f32 %v110, %v729
    %731 = vmatpush.msra.mxu0 %v730
    %v732 = vand.u32 %v102, 4294901760
    %v733 = vsub.f32 %v102, %v732
    %734 = vmatpush.msra.mxu0 %v733
    %v735 = vand.u32 %v94, 4294901760
    %v736 = vsub.f32 %v94, %v735
    %737 = vmatpush.msra.mxu0 %v736
    %v738 = vand.u32 %v86, 4294901760
    %v739 = vsub.f32 %v86, %v738
    %740 = vmatpush.msra.mxu0 %v739
    %v741 = vand.u32 %v78, 4294901760
    %v742 = vsub.f32 %v78, %v741
    %743 = vmatpush.msra.mxu0 %v742
    %v744 = vand.u32 %v142, 4294901760
    %v745 = vsub.f32 %v142, %v744
    %746 = vmatmul.f32.gmra.mxu0 %v745
    %v747 = vpop.f32.mrf.mxu0
    %v748 = vadd.f32 %v710, %v747
    %749 = vdwg.mxu0
    %750 = vmatpush.msra.mxu0 0.0
    %751 = vmatpush.msra.mxu0 0.0
    %752 = vmatpush.msra.mxu0 0.0
    %753 = vmatpush.msra.mxu0 0.0
    %754 = vmatpush.msra.mxu0 0.0
    %755 = vmatpush.msra.mxu0 0.0
    %756 = vmatpush.msra.mxu0 0.0
    %757 = vmatpush.msra.mxu0 0.0
    %v758 = vand.u32 %v134, 4294901760
    %759 = vmatpush.msra.mxu0 %v758
    %v760 = vand.u32 %v126, 4294901760
    %761 = vmatpush.msra.mxu0 %v760
    %v762 = vand.u32 %v118, 4294901760
    %763 = vmatpush.msra.mxu0 %v762
    %v764 = vand.u32 %v110, 4294901760
    %765 = vmatpush.msra.mxu0 %v764
    %v766 = vand.u32 %v102, 4294901760
    %767 = vmatpush.msra.mxu0 %v766
    %v768 = vand.u32 %v94, 4294901760
    %769 = vmatpush.msra.mxu0 %v768
    %v770 = vand.u32 %v86, 4294901760
    %771 = vmatpush.msra.mxu0 %v770
    %v772 = vand.u32 %v78, 4294901760
    %773 = vmatpush.msra.mxu0 %v772
    %v774 = vand.u32 %v142, 4294901760
    %v775 = vsub.f32 %v142, %v774
    %v776 = vand.u32 %v775, 4294901760
    %777 = vmatmul.f32.gmra.mxu0 %v776
    %v778 = vpop.f32.mrf.mxu0
    %v779 = vadd.f32 %v748, %v778
    %780 = vdwg.mxu0
    %781 = vmatpush.msra.mxu0 0.0
    %782 = vmatpush.msra.mxu0 0.0
    %783 = vmatpush.msra.mxu0 0.0
    %784 = vmatpush.msra.mxu0 0.0
    %785 = vmatpush.msra.mxu0 0.0
    %786 = vmatpush.msra.mxu0 0.0
    %787 = vmatpush.msra.mxu0 0.0
    %788 = vmatpush.msra.mxu0 0.0
    %v789 = vand.u32 %v134, 4294901760
    %v790 = vsub.f32 %v134, %v789
    %v791 = vand.u32 %v790, 4294901760
    %792 = vmatpush.msra.mxu0 %v791
    %v793 = vand.u32 %v126, 4294901760
    %v794 = vsub.f32 %v126, %v793
    %v795 = vand.u32 %v794, 4294901760
    %796 = vmatpush.msra.mxu0 %v795
    %v797 = vand.u32 %v118, 4294901760
    %v798 = vsub.f32 %v118, %v797
    %v799 = vand.u32 %v798, 4294901760
    %800 = vmatpush.msra.mxu0 %v799
    %v801 = vand.u32 %v110, 4294901760
    %v802 = vsub.f32 %v110, %v801
    %v803 = vand.u32 %v802, 4294901760
    %804 = vmatpush.msra.mxu0 %v803
    %v805 = vand.u32 %v102, 4294901760
    %v806 = vsub.f32 %v102, %v805
    %v807 = vand.u32 %v806, 4294901760
    %808 = vmatpush.msra.mxu0 %v807
    %v809 = vand.u32 %v94, 4294901760
    %v810 = vsub.f32 %v94, %v809
    %v811 = vand.u32 %v810, 4294901760
    %812 = vmatpush.msra.mxu0 %v811
    %v813 = vand.u32 %v86, 4294901760
    %v814 = vsub.f32 %v86, %v813
    %v815 = vand.u32 %v814, 4294901760
    %816 = vmatpush.msra.mxu0 %v815
    %v817 = vand.u32 %v78, 4294901760
    %v818 = vsub.f32 %v78, %v817
    %v819 = vand.u32 %v818, 4294901760
    %820 = vmatpush.msra.mxu0 %v819
    %v821 = vand.u32 %v142, 4294901760
    %822 = vmatmul.f32.gmra.mxu0 %v821
    %v823 = vpop.f32.mrf.mxu0
    %v824 = vadd.f32 %v779, %v823
    %825 = vdwg.mxu0
    %826 = vmatpush.msra.mxu0 0.0
    %827 = vmatpush.msra.mxu0 0.0
    %828 = vmatpush.msra.mxu0 0.0
    %829 = vmatpush.msra.mxu0 0.0
    %830 = vmatpush.msra.mxu0 0.0
    %831 = vmatpush.msra.mxu0 0.0
    %832 = vmatpush.msra.mxu0 0.0
    %833 = vmatpush.msra.mxu0 0.0
    %v834 = vand.u32 %v134, 4294901760
    %835 = vmatpush.msra.mxu0 %v834
    %v836 = vand.u32 %v126, 4294901760
    %837 = vmatpush.msra.mxu0 %v836
    %v838 = vand.u32 %v118, 4294901760
    %839 = vmatpush.msra.mxu0 %v838
    %v840 = vand.u32 %v110, 4294901760
    %841 = vmatpush.msra.mxu0 %v840
    %v842 = vand.u32 %v102, 4294901760
    %843 = vmatpush.msra.mxu0 %v842
    %v844 = vand.u32 %v94, 4294901760
    %845 = vmatpush.msra.mxu0 %v844
    %v846 = vand.u32 %v86, 4294901760
    %847 = vmatpush.msra.mxu0 %v846
    %v848 = vand.u32 %v78, 4294901760
    %849 = vmatpush.msra.mxu0 %v848
    %v850 = vand.u32 %v142, 4294901760
    %851 = vmatmul.f32.gmra.mxu0 %v850
    %v852 = vpop.f32.mrf.mxu0
    %v853 = vadd.f32 %v824, %v852
    %854 = vdwg.mxu0
    %855 = vmatpush.msra.mxu0 0.0
    %856 = vmatpush.msra.mxu0 0.0
    %857 = vmatpush.msra.mxu0 0.0
    %858 = vmatpush.msra.mxu0 0.0
    %859 = vmatpush.msra.mxu0 0.0
    %860 = vmatpush.msra.mxu0 0.0
    %861 = vmatpush.msra.mxu0 0.0
    %862 = vmatpush.msra.mxu0 0.0
    %v863 = vand.u32 %v135, 4294901760
    %864 = vmatpush.msra.mxu0 %v863
    %v865 = vand.u32 %v127, 4294901760
    %866 = vmatpush.msra.mxu0 %v865
    %v867 = vand.u32 %v119, 4294901760
    %868 = vmatpush.msra.mxu0 %v867
    %v869 = vand.u32 %v111, 4294901760
    %870 = vmatpush.msra.mxu0 %v869
    %v871 = vand.u32 %v103, 4294901760
    %872 = vmatpush.msra.mxu0 %v871
    %v873 = vand.u32 %v95, 4294901760
    %874 = vmatpush.msra.mxu0 %v873
    %v875 = vand.u32 %v87, 4294901760
    %876 = vmatpush.msra.mxu0 %v875
    %v877 = vand.u32 %v79, 4294901760
    %878 = vmatpush.msra.mxu0 %v877
    %v879 = vand.u32 %v142, 4294901760
    %v880 = vsub.f32 %v142, %v879
    %v881 = vand.u32 %v880, 4294901760
    %v882 = vsub.f32 %v880, %v881
    %v883 = vand.u32 %v882, 4294901760
    %884 = vmatmul.f32.gmra.mxu0 %v883
    %v885 = vpop.f32.mrf.mxu0
    %v886 = vadd.f32 0.0, %v885
    %887 = vdwg.mxu0
    %888 = vmatpush.msra.mxu0 0.0
    %889 = vmatpush.msra.mxu0 0.0
    %890 = vmatpush.msra.mxu0 0.0
    %891 = vmatpush.msra.mxu0 0.0
    %892 = vmatpush.msra.mxu0 0.0
    %893 = vmatpush.msra.mxu0 0.0
    %894 = vmatpush.msra.mxu0 0.0
    %895 = vmatpush.msra.mxu0 0.0
    %v896 = vand.u32 %v135, 4294901760
    %v897 = vsub.f32 %v135, %v896
    %v898 = vand.u32 %v897, 4294901760
    %v899 = vsub.f32 %v897, %v898
    %v900 = vand.u32 %v899, 4294901760
    %901 = vmatpush.msra.mxu0 %v900
    %v902 = vand.u32 %v127, 4294901760
    %v903 = vsub.f32 %v127, %v902
    %v904 = vand.u32 %v903, 4294901760
    %v905 = vsub.f32 %v903, %v904
    %v906 = vand.u32 %v905, 4294901760
    %907 = vmatpush.msra.mxu0 %v906
    %v908 = vand.u32 %v119, 4294901760
    %v909 = vsub.f32 %v119, %v908
    %v910 = vand.u32 %v909, 4294901760
    %v911 = vsub.f32 %v909, %v910
    %v912 = vand.u32 %v911, 4294901760
    %913 = vmatpush.msra.mxu0 %v912
    %v914 = vand.u32 %v111, 4294901760
    %v915 = vsub.f32 %v111, %v914
    %v916 = vand.u32 %v915, 4294901760
    %v917 = vsub.f32 %v915, %v916
    %v918 = vand.u32 %v917, 4294901760
    %919 = vmatpush.msra.mxu0 %v918
    %v920 = vand.u32 %v103, 4294901760
    %v921 = vsub.f32 %v103, %v920
    %v922 = vand.u32 %v921, 4294901760
    %v923 = vsub.f32 %v921, %v922
    %v924 = vand.u32 %v923, 4294901760
    %925 = vmatpush.msra.mxu0 %v924
    %v926 = vand.u32 %v95, 4294901760
    %v927 = vsub.f32 %v95, %v926
    %v928 = vand.u32 %v927, 4294901760
    %v929 = vsub.f32 %v927, %v928
    %v930 = vand.u32 %v929, 4294901760
    %931 = vmatpush.msra.mxu0 %v930
    %v932 = vand.u32 %v87, 4294901760
    %v933 = vsub.f32 %v87, %v932
    %v934 = vand.u32 %v933, 4294901760
    %v935 = vsub.f32 %v933, %v934
    %v936 = vand.u32 %v935, 4294901760
    %937 = vmatpush.msra.mxu0 %v936
    %v938 = vand.u32 %v79, 4294901760
    %v939 = vsub.f32 %v79, %v938
    %v940 = vand.u32 %v939, 4294901760
    %v941 = vsub.f32 %v939, %v940
    %v942 = vand.u32 %v941, 4294901760
    %943 = vmatpush.msra.mxu0 %v942
    %v944 = vand.u32 %v142, 4294901760
    %945 = vmatmul.f32.gmra.mxu0 %v944
    %v946 = vpop.f32.mrf.mxu0
    %v947 = vadd.f32 %v886, %v946
    %948 = vdwg.mxu0
    %949 = vmatpush.msra.mxu0 0.0
    %950 = vmatpush.msra.mxu0 0.0
    %951 = vmatpush.msra.mxu0 0.0
    %952 = vmatpush.msra.mxu0 0.0
    %953 = vmatpush.msra.mxu0 0.0
    %954 = vmatpush.msra.mxu0 0.0
    %955 = vmatpush.msra.mxu0 0.0
    %956 = vmatpush.msra.mxu0 0.0
    %v957 = vand.u32 %v135, 4294901760
    %v958 = vsub.f32 %v135, %v957
    %959 = vmatpush.msra.mxu0 %v958
    %v960 = vand.u32 %v127, 4294901760
    %v961 = vsub.f32 %v127, %v960
    %962 = vmatpush.msra.mxu0 %v961
    %v963 = vand.u32 %v119, 4294901760
    %v964 = vsub.f32 %v119, %v963
    %965 = vmatpush.msra.mxu0 %v964
    %v966 = vand.u32 %v111, 4294901760
    %v967 = vsub.f32 %v111, %v966
    %968 = vmatpush.msra.mxu0 %v967
    %v969 = vand.u32 %v103, 4294901760
    %v970 = vsub.f32 %v103, %v969
    %971 = vmatpush.msra.mxu0 %v970
    %v972 = vand.u32 %v95, 4294901760
    %v973 = vsub.f32 %v95, %v972
    %974 = vmatpush.msra.mxu0 %v973
    %v975 = vand.u32 %v87, 4294901760
    %v976 = vsub.f32 %v87, %v975
    %977 = vmatpush.msra.mxu0 %v976
    %v978 = vand.u32 %v79, 4294901760
    %v979 = vsub.f32 %v79, %v978
    %980 = vmatpush.msra.mxu0 %v979
    %v981 = vand.u32 %v142, 4294901760
    %v982 = vsub.f32 %v142, %v981
    %983 = vmatmul.f32.gmra.mxu0 %v982
    %v984 = vpop.f32.mrf.mxu0
    %v985 = vadd.f32 %v947, %v984
    %986 = vdwg.mxu0
    %987 = vmatpush.msra.mxu0 0.0
    %988 = vmatpush.msra.mxu0 0.0
    %989 = vmatpush.msra.mxu0 0.0
    %990 = vmatpush.msra.mxu0 0.0
    %991 = vmatpush.msra.mxu0 0.0
    %992 = vmatpush.msra.mxu0 0.0
    %993 = vmatpush.msra.mxu0 0.0
    %994 = vmatpush.msra.mxu0 0.0
    %v995 = vand.u32 %v135, 4294901760
    %996 = vmatpush.msra.mxu0 %v995
    %v997 = vand.u32 %v127, 4294901760
    %998 = vmatpush.msra.mxu0 %v997
    %v999 = vand.u32 %v119, 4294901760
    %1000 = vmatpush.msra.mxu0 %v999
    %v1001 = vand.u32 %v111, 4294901760
    %1002 = vmatpush.msra.mxu0 %v1001
    %v1003 = vand.u32 %v103, 4294901760
    %1004 = vmatpush.msra.mxu0 %v1003
    %v1005 = vand.u32 %v95, 4294901760
    %1006 = vmatpush.msra.mxu0 %v1005
    %v1007 = vand.u32 %v87, 4294901760
    %1008 = vmatpush.msra.mxu0 %v1007
    %v1009 = vand.u32 %v79, 4294901760
    %1010 = vmatpush.msra.mxu0 %v1009
    %v1011 = vand.u32 %v142, 4294901760
    %v1012 = vsub.f32 %v142, %v1011
    %v1013 = vand.u32 %v1012, 4294901760
    %1014 = vmatmul.f32.gmra.mxu0 %v1013
    %v1015 = vpop.f32.mrf.mxu0
    %v1016 = vadd.f32 %v985, %v1015
    %1017 = vdwg.mxu0
    %1018 = vmatpush.msra.mxu0 0.0
    %1019 = vmatpush.msra.mxu0 0.0
    %1020 = vmatpush.msra.mxu0 0.0
    %1021 = vmatpush.msra.mxu0 0.0
    %1022 = vmatpush.msra.mxu0 0.0
    %1023 = vmatpush.msra.mxu0 0.0
    %1024 = vmatpush.msra.mxu0 0.0
    %1025 = vmatpush.msra.mxu0 0.0
    %v1026 = vand.u32 %v135, 4294901760
    %v1027 = vsub.f32 %v135, %v1026
    %v1028 = vand.u32 %v1027, 4294901760
    %1029 = vmatpush.msra.mxu0 %v1028
    %v1030 = vand.u32 %v127, 4294901760
    %v1031 = vsub.f32 %v127, %v1030
    %v1032 = vand.u32 %v1031, 4294901760
    %1033 = vmatpush.msra.mxu0 %v1032
    %v1034 = vand.u32 %v119, 4294901760
    %v1035 = vsub.f32 %v119, %v1034
    %v1036 = vand.u32 %v1035, 4294901760
    %1037 = vmatpush.msra.mxu0 %v1036
    %v1038 = vand.u32 %v111, 4294901760
    %v1039 = vsub.f32 %v111, %v1038
    %v1040 = vand.u32 %v1039, 4294901760
    %1041 = vmatpush.msra.mxu0 %v1040
    %v1042 = vand.u32 %v103, 4294901760
    %v1043 = vsub.f32 %v103, %v1042
    %v1044 = vand.u32 %v1043, 4294901760
    %1045 = vmatpush.msra.mxu0 %v1044
    %v1046 = vand.u32 %v95, 4294901760
    %v1047 = vsub.f32 %v95, %v1046
    %v1048 = vand.u32 %v1047, 4294901760
    %1049 = vmatpush.msra.mxu0 %v1048
    %v1050 = vand.u32 %v87, 4294901760
    %v1051 = vsub.f32 %v87, %v1050
    %v1052 = vand.u32 %v1051, 4294901760
    %1053 = vmatpush.msra.mxu0 %v1052
    %v1054 = vand.u32 %v79, 4294901760
    %v1055 = vsub.f32 %v79, %v1054
    %v1056 = vand.u32 %v1055, 4294901760
    %1057 = vmatpush.msra.mxu0 %v1056
    %v1058 = vand.u32 %v142, 4294901760
    %1059 = vmatmul.f32.gmra.mxu0 %v1058
    %v1060 = vpop.f32.mrf.mxu0
    %v1061 = vadd.f32 %v1016, %v1060
    %1062 = vdwg.mxu0
    %1063 = vmatpush.msra.mxu0 0.0
    %1064 = vmatpush.msra.mxu0 0.0
    %1065 = vmatpush.msra.mxu0 0.0
    %1066 = vmatpush.msra.mxu0 0.0
    %1067 = vmatpush.msra.mxu0 0.0
    %1068 = vmatpush.msra.mxu0 0.0
    %1069 = vmatpush.msra.mxu0 0.0
    %1070 = vmatpush.msra.mxu0 0.0
    %v1071 = vand.u32 %v135, 4294901760
    %1072 = vmatpush.msra.mxu0 %v1071
    %v1073 = vand.u32 %v127, 4294901760
    %1074 = vmatpush.msra.mxu0 %v1073
    %v1075 = vand.u32 %v119, 4294901760
    %1076 = vmatpush.msra.mxu0 %v1075
    %v1077 = vand.u32 %v111, 4294901760
    %1078 = vmatpush.msra.mxu0 %v1077
    %v1079 = vand.u32 %v103, 4294901760
    %1080 = vmatpush.msra.mxu0 %v1079
    %v1081 = vand.u32 %v95, 4294901760
    %1082 = vmatpush.msra.mxu0 %v1081
    %v1083 = vand.u32 %v87, 4294901760
    %1084 = vmatpush.msra.mxu0 %v1083
    %v1085 = vand.u32 %v79, 4294901760
    %1086 = vmatpush.msra.mxu0 %v1085
    %v1087 = vand.u32 %v142, 4294901760
    %1088 = vmatmul.f32.gmra.mxu0 %v1087
    %v1089 = vpop.f32.mrf.mxu0
    %v1090 = vadd.f32 %v1061, %v1089
    %1091 = vdwg.mxu0
    %1092 = vmatpush.msra.mxu0 0.0
    %1093 = vmatpush.msra.mxu0 0.0
    %1094 = vmatpush.msra.mxu0 0.0
    %1095 = vmatpush.msra.mxu0 0.0
    %1096 = vmatpush.msra.mxu0 0.0
    %1097 = vmatpush.msra.mxu0 0.0
    %1098 = vmatpush.msra.mxu0 0.0
    %1099 = vmatpush.msra.mxu0 0.0
    %v1100 = vand.u32 %v136, 4294901760
    %1101 = vmatpush.msra.mxu0 %v1100
    %v1102 = vand.u32 %v128, 4294901760
    %1103 = vmatpush.msra.mxu0 %v1102
    %v1104 = vand.u32 %v120, 4294901760
    %1105 = vmatpush.msra.mxu0 %v1104
    %v1106 = vand.u32 %v112, 4294901760
    %1107 = vmatpush.msra.mxu0 %v1106
    %v1108 = vand.u32 %v104, 4294901760
    %1109 = vmatpush.msra.mxu0 %v1108
    %v1110 = vand.u32 %v96, 4294901760
    %1111 = vmatpush.msra.mxu0 %v1110
    %v1112 = vand.u32 %v88, 4294901760
    %1113 = vmatpush.msra.mxu0 %v1112
    %v1114 = vand.u32 %v80, 4294901760
    %1115 = vmatpush.msra.mxu0 %v1114
    %v1116 = vand.u32 %v142, 4294901760
    %v1117 = vsub.f32 %v142, %v1116
    %v1118 = vand.u32 %v1117, 4294901760
    %v1119 = vsub.f32 %v1117, %v1118
    %v1120 = vand.u32 %v1119, 4294901760
    %1121 = vmatmul.f32.gmra.mxu0 %v1120
    %v1122 = vpop.f32.mrf.mxu0
    %v1123 = vadd.f32 0.0, %v1122
    %1124 = vdwg.mxu0
    %1125 = vmatpush.msra.mxu0 0.0
    %1126 = vmatpush.msra.mxu0 0.0
    %1127 = vmatpush.msra.mxu0 0.0
    %1128 = vmatpush.msra.mxu0 0.0
    %1129 = vmatpush.msra.mxu0 0.0
    %1130 = vmatpush.msra.mxu0 0.0
    %1131 = vmatpush.msra.mxu0 0.0
    %1132 = vmatpush.msra.mxu0 0.0
    %v1133 = vand.u32 %v136, 4294901760
    %v1134 = vsub.f32 %v136, %v1133
    %v1135 = vand.u32 %v1134, 4294901760
    %v1136 = vsub.f32 %v1134, %v1135
    %v1137 = vand.u32 %v1136, 4294901760
    %1138 = vmatpush.msra.mxu0 %v1137
    %v1139 = vand.u32 %v128, 4294901760
    %v1140 = vsub.f32 %v128, %v1139
    %v1141 = vand.u32 %v1140, 4294901760
    %v1142 = vsub.f32 %v1140, %v1141
    %v1143 = vand.u32 %v1142, 4294901760
    %1144 = vmatpush.msra.mxu0 %v1143
    %v1145 = vand.u32 %v120, 4294901760
    %v1146 = vsub.f32 %v120, %v1145
    %v1147 = vand.u32 %v1146, 4294901760
    %v1148 = vsub.f32 %v1146, %v1147
    %v1149 = vand.u32 %v1148, 4294901760
    %1150 = vmatpush.msra.mxu0 %v1149
    %v1151 = vand.u32 %v112, 4294901760
    %v1152 = vsub.f32 %v112, %v1151
    %v1153 = vand.u32 %v1152, 4294901760
    %v1154 = vsub.f32 %v1152, %v1153
    %v1155 = vand.u32 %v1154, 4294901760
    %1156 = vmatpush.msra.mxu0 %v1155
    %v1157 = vand.u32 %v104, 4294901760
    %v1158 = vsub.f32 %v104, %v1157
    %v1159 = vand.u32 %v1158, 4294901760
    %v1160 = vsub.f32 %v1158, %v1159
    %v1161 = vand.u32 %v1160, 4294901760
    %1162 = vmatpush.msra.mxu0 %v1161
    %v1163 = vand.u32 %v96, 4294901760
    %v1164 = vsub.f32 %v96, %v1163
    %v1165 = vand.u32 %v1164, 4294901760
    %v1166 = vsub.f32 %v1164, %v1165
    %v1167 = vand.u32 %v1166, 4294901760
    %1168 = vmatpush.msra.mxu0 %v1167
    %v1169 = vand.u32 %v88, 4294901760
    %v1170 = vsub.f32 %v88, %v1169
    %v1171 = vand.u32 %v1170, 4294901760
    %v1172 = vsub.f32 %v1170, %v1171
    %v1173 = vand.u32 %v1172, 4294901760
    %1174 = vmatpush.msra.mxu0 %v1173
    %v1175 = vand.u32 %v80, 4294901760
    %v1176 = vsub.f32 %v80, %v1175
    %v1177 = vand.u32 %v1176, 4294901760
    %v1178 = vsub.f32 %v1176, %v1177
    %v1179 = vand.u32 %v1178, 4294901760
    %1180 = vmatpush.msra.mxu0 %v1179
    %v1181 = vand.u32 %v142, 4294901760
    %1182 = vmatmul.f32.gmra.mxu0 %v1181
    %v1183 = vpop.f32.mrf.mxu0
    %v1184 = vadd.f32 %v1123, %v1183
    %1185 = vdwg.mxu0
    %1186 = vmatpush.msra.mxu0 0.0
    %1187 = vmatpush.msra.mxu0 0.0
    %1188 = vmatpush.msra.mxu0 0.0
    %1189 = vmatpush.msra.mxu0 0.0
    %1190 = vmatpush.msra.mxu0 0.0
    %1191 = vmatpush.msra.mxu0 0.0
    %1192 = vmatpush.msra.mxu0 0.0
    %1193 = vmatpush.msra.mxu0 0.0
    %v1194 = vand.u32 %v136, 4294901760
    %v1195 = vsub.f32 %v136, %v1194
    %1196 = vmatpush.msra.mxu0 %v1195
    %v1197 = vand.u32 %v128, 4294901760
    %v1198 = vsub.f32 %v128, %v1197
    %1199 = vmatpush.msra.mxu0 %v1198
    %v1200 = vand.u32 %v120, 4294901760
    %v1201 = vsub.f32 %v120, %v1200
    %1202 = vmatpush.msra.mxu0 %v1201
    %v1203 = vand.u32 %v112, 4294901760
    %v1204 = vsub.f32 %v112, %v1203
    %1205 = vmatpush.msra.mxu0 %v1204
    %v1206 = vand.u32 %v104, 4294901760
    %v1207 = vsub.f32 %v104, %v1206
    %1208 = vmatpush.msra.mxu0 %v1207
    %v1209 = vand.u32 %v96, 4294901760
    %v1210 = vsub.f32 %v96, %v1209
    %1211 = vmatpush.msra.mxu0 %v1210
    %v1212 = vand.u32 %v88, 4294901760
    %v1213 = vsub.f32 %v88, %v1212
    %1214 = vmatpush.msra.mxu0 %v1213
    %v1215 = vand.u32 %v80, 4294901760
    %v1216 = vsub.f32 %v80, %v1215
    %1217 = vmatpush.msra.mxu0 %v1216
    %v1218 = vand.u32 %v142, 4294901760
    %v1219 = vsub.f32 %v142, %v1218
    %1220 = vmatmul.f32.gmra.mxu0 %v1219
    %v1221 = vpop.f32.mrf.mxu0
    %v1222 = vadd.f32 %v1184, %v1221
    %1223 = vdwg.mxu0
    %1224 = vmatpush.msra.mxu0 0.0
    %1225 = vmatpush.msra.mxu0 0.0
    %1226 = vmatpush.msra.mxu0 0.0
    %1227 = vmatpush.msra.mxu0 0.0
    %1228 = vmatpush.msra.mxu0 0.0
    %1229 = vmatpush.msra.mxu0 0.0
    %1230 = vmatpush.msra.mxu0 0.0
    %1231 = vmatpush.msra.mxu0 0.0
    %v1232 = vand.u32 %v136, 4294901760
    %1233 = vmatpush.msra.mxu0 %v1232
    %v1234 = vand.u32 %v128, 4294901760
    %1235 = vmatpush.msra.mxu0 %v1234
    %v1236 = vand.u32 %v120, 4294901760
    %1237 = vmatpush.msra.mxu0 %v1236
    %v1238 = vand.u32 %v112, 4294901760
    %1239 = vmatpush.msra.mxu0 %v1238
    %v1240 = vand.u32 %v104, 4294901760
    %1241 = vmatpush.msra.mxu0 %v1240
    %v1242 = vand.u32 %v96, 4294901760
    %1243 = vmatpush.msra.mxu0 %v1242
    %v1244 = vand.u32 %v88, 4294901760
    %1245 = vmatpush.msra.mxu0 %v1244
    %v1246 = vand.u32 %v80, 4294901760
    %1247 = vmatpush.msra.mxu0 %v1246
    %v1248 = vand.u32 %v142, 4294901760
    %v1249 = vsub.f32 %v142, %v1248
    %v1250 = vand.u32 %v1249, 4294901760
    %1251 = vmatmul.f32.gmra.mxu0 %v1250
    %v1252 = vpop.f32.mrf.mxu0
    %v1253 = vadd.f32 %v1222, %v1252
    %1254 = vdwg.mxu0
    %1255 = vmatpush.msra.mxu0 0.0
    %1256 = vmatpush.msra.mxu0 0.0
    %1257 = vmatpush.msra.mxu0 0.0
    %1258 = vmatpush.msra.mxu0 0.0
    %1259 = vmatpush.msra.mxu0 0.0
    %1260 = vmatpush.msra.mxu0 0.0
    %1261 = vmatpush.msra.mxu0 0.0
    %1262 = vmatpush.msra.mxu0 0.0
    %v1263 = vand.u32 %v136, 4294901760
    %v1264 = vsub.f32 %v136, %v1263
    %v1265 = vand.u32 %v1264, 4294901760
    %1266 = vmatpush.msra.mxu0 %v1265
    %v1267 = vand.u32 %v128, 4294901760
    %v1268 = vsub.f32 %v128, %v1267
    %v1269 = vand.u32 %v1268, 4294901760
    %1270 = vmatpush.msra.mxu0 %v1269
    %v1271 = vand.u32 %v120, 4294901760
    %v1272 = vsub.f32 %v120, %v1271
    %v1273 = vand.u32 %v1272, 4294901760
    %1274 = vmatpush.msra.mxu0 %v1273
    %v1275 = vand.u32 %v112, 4294901760
    %v1276 = vsub.f32 %v112, %v1275
    %v1277 = vand.u32 %v1276, 4294901760
    %1278 = vmatpush.msra.mxu0 %v1277
    %v1279 = vand.u32 %v104, 4294901760
    %v1280 = vsub.f32 %v104, %v1279
    %v1281 = vand.u32 %v1280, 4294901760
    %1282 = vmatpush.msra.mxu0 %v1281
    %v1283 = vand.u32 %v96, 4294901760
    %v1284 = vsub.f32 %v96, %v1283
    %v1285 = vand.u32 %v1284, 4294901760
    %1286 = vmatpush.msra.mxu0 %v1285
    %v1287 = vand.u32 %v88, 4294901760
    %v1288 = vsub.f32 %v88, %v1287
    %v1289 = vand.u32 %v1288, 4294901760
    %1290 = vmatpush.msra.mxu0 %v1289
    %v1291 = vand.u32 %v80, 4294901760
    %v1292 = vsub.f32 %v80, %v1291
    %v1293 = vand.u32 %v1292, 4294901760
    %1294 = vmatpush.msra.mxu0 %v1293
    %v1295 = vand.u32 %v142, 4294901760
    %1296 = vmatmul.f32.gmra.mxu0 %v1295
    %v1297 = vpop.f32.mrf.mxu0
    %v1298 = vadd.f32 %v1253, %v1297
    %1299 = vdwg.mxu0
    %1300 = vmatpush.msra.mxu0 0.0
    %1301 = vmatpush.msra.mxu0 0.0
    %1302 = vmatpush.msra.mxu0 0.0
    %1303 = vmatpush.msra.mxu0 0.0
    %1304 = vmatpush.msra.mxu0 0.0
    %1305 = vmatpush.msra.mxu0 0.0
    %1306 = vmatpush.msra.mxu0 0.0
    %1307 = vmatpush.msra.mxu0 0.0
    %v1308 = vand.u32 %v136, 4294901760
    %1309 = vmatpush.msra.mxu0 %v1308
    %v1310 = vand.u32 %v128, 4294901760
    %1311 = vmatpush.msra.mxu0 %v1310
    %v1312 = vand.u32 %v120, 4294901760
    %1313 = vmatpush.msra.mxu0 %v1312
    %v1314 = vand.u32 %v112, 4294901760
    %1315 = vmatpush.msra.mxu0 %v1314
    %v1316 = vand.u32 %v104, 4294901760
    %1317 = vmatpush.msra.mxu0 %v1316
    %v1318 = vand.u32 %v96, 4294901760
    %1319 = vmatpush.msra.mxu0 %v1318
    %v1320 = vand.u32 %v88, 4294901760
    %1321 = vmatpush.msra.mxu0 %v1320
    %v1322 = vand.u32 %v80, 4294901760
    %1323 = vmatpush.msra.mxu0 %v1322
    %v1324 = vand.u32 %v142, 4294901760
    %1325 = vmatmul.f32.gmra.mxu0 %v1324
    %v1326 = vpop.f32.mrf.mxu0
    %v1327 = vadd.f32 %v1298, %v1326
    %1328 = vdwg.mxu0
    %1329 = vmatpush.msra.mxu0 0.0
    %1330 = vmatpush.msra.mxu0 0.0
    %1331 = vmatpush.msra.mxu0 0.0
    %1332 = vmatpush.msra.mxu0 0.0
    %1333 = vmatpush.msra.mxu0 0.0
    %1334 = vmatpush.msra.mxu0 0.0
    %1335 = vmatpush.msra.mxu0 0.0
    %1336 = vmatpush.msra.mxu0 0.0
    %v1337 = vand.u32 %v137, 4294901760
    %1338 = vmatpush.msra.mxu0 %v1337
    %v1339 = vand.u32 %v129, 4294901760
    %1340 = vmatpush.msra.mxu0 %v1339
    %v1341 = vand.u32 %v121, 4294901760
    %1342 = vmatpush.msra.mxu0 %v1341
    %v1343 = vand.u32 %v113, 4294901760
    %1344 = vmatpush.msra.mxu0 %v1343
    %v1345 = vand.u32 %v105, 4294901760
    %1346 = vmatpush.msra.mxu0 %v1345
    %v1347 = vand.u32 %v97, 4294901760
    %1348 = vmatpush.msra.mxu0 %v1347
    %v1349 = vand.u32 %v89, 4294901760
    %1350 = vmatpush.msra.mxu0 %v1349
    %v1351 = vand.u32 %v81, 4294901760
    %1352 = vmatpush.msra.mxu0 %v1351
    %v1353 = vand.u32 %v142, 4294901760
    %v1354 = vsub.f32 %v142, %v1353
    %v1355 = vand.u32 %v1354, 4294901760
    %v1356 = vsub.f32 %v1354, %v1355
    %v1357 = vand.u32 %v1356, 4294901760
    %1358 = vmatmul.f32.gmra.mxu0 %v1357
    %v1359 = vpop.f32.mrf.mxu0
    %v1360 = vadd.f32 0.0, %v1359
    %1361 = vdwg.mxu0
    %1362 = vmatpush.msra.mxu0 0.0
    %1363 = vmatpush.msra.mxu0 0.0
    %1364 = vmatpush.msra.mxu0 0.0
    %1365 = vmatpush.msra.mxu0 0.0
    %1366 = vmatpush.msra.mxu0 0.0
    %1367 = vmatpush.msra.mxu0 0.0
    %1368 = vmatpush.msra.mxu0 0.0
    %1369 = vmatpush.msra.mxu0 0.0
    %v1370 = vand.u32 %v137, 4294901760
    %v1371 = vsub.f32 %v137, %v1370
    %v1372 = vand.u32 %v1371, 4294901760
    %v1373 = vsub.f32 %v1371, %v1372
    %v1374 = vand.u32 %v1373, 4294901760
    %1375 = vmatpush.msra.mxu0 %v1374
    %v1376 = vand.u32 %v129, 4294901760
    %v1377 = vsub.f32 %v129, %v1376
    %v1378 = vand.u32 %v1377, 4294901760
    %v1379 = vsub.f32 %v1377, %v1378
    %v1380 = vand.u32 %v1379, 4294901760
    %1381 = vmatpush.msra.mxu0 %v1380
    %v1382 = vand.u32 %v121, 4294901760
    %v1383 = vsub.f32 %v121, %v1382
    %v1384 = vand.u32 %v1383, 4294901760
    %v1385 = vsub.f32 %v1383, %v1384
    %v1386 = vand.u32 %v1385, 4294901760
    %1387 = vmatpush.msra.mxu0 %v1386
    %v1388 = vand.u32 %v113, 4294901760
    %v1389 = vsub.f32 %v113, %v1388
    %v1390 = vand.u32 %v1389, 4294901760
    %v1391 = vsub.f32 %v1389, %v1390
    %v1392 = vand.u32 %v1391, 4294901760
    %1393 = vmatpush.msra.mxu0 %v1392
    %v1394 = vand.u32 %v105, 4294901760
    %v1395 = vsub.f32 %v105, %v1394
    %v1396 = vand.u32 %v1395, 4294901760
    %v1397 = vsub.f32 %v1395, %v1396
    %v1398 = vand.u32 %v1397, 4294901760
    %1399 = vmatpush.msra.mxu0 %v1398
    %v1400 = vand.u32 %v97, 4294901760
    %v1401 = vsub.f32 %v97, %v1400
    %v1402 = vand.u32 %v1401, 4294901760
    %v1403 = vsub.f32 %v1401, %v1402
    %v1404 = vand.u32 %v1403, 4294901760
    %1405 = vmatpush.msra.mxu0 %v1404
    %v1406 = vand.u32 %v89, 4294901760
    %v1407 = vsub.f32 %v89, %v1406
    %v1408 = vand.u32 %v1407, 4294901760
    %v1409 = vsub.f32 %v1407, %v1408
    %v1410 = vand.u32 %v1409, 4294901760
    %1411 = vmatpush.msra.mxu0 %v1410
    %v1412 = vand.u32 %v81, 4294901760
    %v1413 = vsub.f32 %v81, %v1412
    %v1414 = vand.u32 %v1413, 4294901760
    %v1415 = vsub.f32 %v1413, %v1414
    %v1416 = vand.u32 %v1415, 4294901760
    %1417 = vmatpush.msra.mxu0 %v1416
    %v1418 = vand.u32 %v142, 4294901760
    %1419 = vmatmul.f32.gmra.mxu0 %v1418
    %v1420 = vpop.f32.mrf.mxu0
    %v1421 = vadd.f32 %v1360, %v1420
    %1422 = vdwg.mxu0
    %1423 = vmatpush.msra.mxu0 0.0
    %1424 = vmatpush.msra.mxu0 0.0
    %1425 = vmatpush.msra.mxu0 0.0
    %1426 = vmatpush.msra.mxu0 0.0
    %1427 = vmatpush.msra.mxu0 0.0
    %1428 = vmatpush.msra.mxu0 0.0
    %1429 = vmatpush.msra.mxu0 0.0
    %1430 = vmatpush.msra.mxu0 0.0
    %v1431 = vand.u32 %v137, 4294901760
    %v1432 = vsub.f32 %v137, %v1431
    %1433 = vmatpush.msra.mxu0 %v1432
    %v1434 = vand.u32 %v129, 4294901760
    %v1435 = vsub.f32 %v129, %v1434
    %1436 = vmatpush.msra.mxu0 %v1435
    %v1437 = vand.u32 %v121, 4294901760
    %v1438 = vsub.f32 %v121, %v1437
    %1439 = vmatpush.msra.mxu0 %v1438
    %v1440 = vand.u32 %v113, 4294901760
    %v1441 = vsub.f32 %v113, %v1440
    %1442 = vmatpush.msra.mxu0 %v1441
    %v1443 = vand.u32 %v105, 4294901760
    %v1444 = vsub.f32 %v105, %v1443
    %1445 = vmatpush.msra.mxu0 %v1444
    %v1446 = vand.u32 %v97, 4294901760
    %v1447 = vsub.f32 %v97, %v1446
    %1448 = vmatpush.msra.mxu0 %v1447
    %v1449 = vand.u32 %v89, 4294901760
    %v1450 = vsub.f32 %v89, %v1449
    %1451 = vmatpush.msra.mxu0 %v1450
    %v1452 = vand.u32 %v81, 4294901760
    %v1453 = vsub.f32 %v81, %v1452
    %1454 = vmatpush.msra.mxu0 %v1453
    %v1455 = vand.u32 %v142, 4294901760
    %v1456 = vsub.f32 %v142, %v1455
    %1457 = vmatmul.f32.gmra.mxu0 %v1456
    %v1458 = vpop.f32.mrf.mxu0
    %v1459 = vadd.f32 %v1421, %v1458
    %1460 = vdwg.mxu0
    %1461 = vmatpush.msra.mxu0 0.0
    %1462 = vmatpush.msra.mxu0 0.0
    %1463 = vmatpush.msra.mxu0 0.0
    %1464 = vmatpush.msra.mxu0 0.0
    %1465 = vmatpush.msra.mxu0 0.0
    %1466 = vmatpush.msra.mxu0 0.0
    %1467 = vmatpush.msra.mxu0 0.0
    %1468 = vmatpush.msra.mxu0 0.0
    %v1469 = vand.u32 %v137, 4294901760
    %1470 = vmatpush.msra.mxu0 %v1469
    %v1471 = vand.u32 %v129, 4294901760
    %1472 = vmatpush.msra.mxu0 %v1471
    %v1473 = vand.u32 %v121, 4294901760
    %1474 = vmatpush.msra.mxu0 %v1473
    %v1475 = vand.u32 %v113, 4294901760
    %1476 = vmatpush.msra.mxu0 %v1475
    %v1477 = vand.u32 %v105, 4294901760
    %1478 = vmatpush.msra.mxu0 %v1477
    %v1479 = vand.u32 %v97, 4294901760
    %1480 = vmatpush.msra.mxu0 %v1479
    %v1481 = vand.u32 %v89, 4294901760
    %1482 = vmatpush.msra.mxu0 %v1481
    %v1483 = vand.u32 %v81, 4294901760
    %1484 = vmatpush.msra.mxu0 %v1483
    %v1485 = vand.u32 %v142, 4294901760
    %v1486 = vsub.f32 %v142, %v1485
    %v1487 = vand.u32 %v1486, 4294901760
    %1488 = vmatmul.f32.gmra.mxu0 %v1487
    %v1489 = vpop.f32.mrf.mxu0
    %v1490 = vadd.f32 %v1459, %v1489
    %1491 = vdwg.mxu0
    %1492 = vmatpush.msra.mxu0 0.0
    %1493 = vmatpush.msra.mxu0 0.0
    %1494 = vmatpush.msra.mxu0 0.0
    %1495 = vmatpush.msra.mxu0 0.0
    %1496 = vmatpush.msra.mxu0 0.0
    %1497 = vmatpush.msra.mxu0 0.0
    %1498 = vmatpush.msra.mxu0 0.0
    %1499 = vmatpush.msra.mxu0 0.0
    %v1500 = vand.u32 %v137, 4294901760
    %v1501 = vsub.f32 %v137, %v1500
    %v1502 = vand.u32 %v1501, 4294901760
    %1503 = vmatpush.msra.mxu0 %v1502
    %v1504 = vand.u32 %v129, 4294901760
    %v1505 = vsub.f32 %v129, %v1504
    %v1506 = vand.u32 %v1505, 4294901760
    %1507 = vmatpush.msra.mxu0 %v1506
    %v1508 = vand.u32 %v121, 4294901760
    %v1509 = vsub.f32 %v121, %v1508
    %v1510 = vand.u32 %v1509, 4294901760
    %1511 = vmatpush.msra.mxu0 %v1510
    %v1512 = vand.u32 %v113, 4294901760
    %v1513 = vsub.f32 %v113, %v1512
    %v1514 = vand.u32 %v1513, 4294901760
    %1515 = vmatpush.msra.mxu0 %v1514
    %v1516 = vand.u32 %v105, 4294901760
    %v1517 = vsub.f32 %v105, %v1516
    %v1518 = vand.u32 %v1517, 4294901760
    %1519 = vmatpush.msra.mxu0 %v1518
    %v1520 = vand.u32 %v97, 4294901760
    %v1521 = vsub.f32 %v97, %v1520
    %v1522 = vand.u32 %v1521, 4294901760
    %1523 = vmatpush.msra.mxu0 %v1522
    %v1524 = vand.u32 %v89, 4294901760
    %v1525 = vsub.f32 %v89, %v1524
    %v1526 = vand.u32 %v1525, 4294901760
    %1527 = vmatpush.msra.mxu0 %v1526
    %v1528 = vand.u32 %v81, 4294901760
    %v1529 = vsub.f32 %v81, %v1528
    %v1530 = vand.u32 %v1529, 4294901760
    %1531 = vmatpush.msra.mxu0 %v1530
    %v1532 = vand.u32 %v142, 4294901760
    %1533 = vmatmul.f32.gmra.mxu0 %v1532
    %v1534 = vpop.f32.mrf.mxu0
    %v1535 = vadd.f32 %v1490, %v1534
    %1536 = vdwg.mxu0
    %1537 = vmatpush.msra.mxu0 0.0
    %1538 = vmatpush.msra.mxu0 0.0
    %1539 = vmatpush.msra.mxu0 0.0
    %1540 = vmatpush.msra.mxu0 0.0
    %1541 = vmatpush.msra.mxu0 0.0
    %1542 = vmatpush.msra.mxu0 0.0
    %1543 = vmatpush.msra.mxu0 0.0
    %1544 = vmatpush.msra.mxu0 0.0
    %v1545 = vand.u32 %v137, 4294901760
    %1546 = vmatpush.msra.mxu0 %v1545
    %v1547 = vand.u32 %v129, 4294901760
    %1548 = vmatpush.msra.mxu0 %v1547
    %v1549 = vand.u32 %v121, 4294901760
    %1550 = vmatpush.msra.mxu0 %v1549
    %v1551 = vand.u32 %v113, 4294901760
    %1552 = vmatpush.msra.mxu0 %v1551
    %v1553 = vand.u32 %v105, 4294901760
    %1554 = vmatpush.msra.mxu0 %v1553
    %v1555 = vand.u32 %v97, 4294901760
    %1556 = vmatpush.msra.mxu0 %v1555
    %v1557 = vand.u32 %v89, 4294901760
    %1558 = vmatpush.msra.mxu0 %v1557
    %v1559 = vand.u32 %v81, 4294901760
    %1560 = vmatpush.msra.mxu0 %v1559
    %v1561 = vand.u32 %v142, 4294901760
    %1562 = vmatmul.f32.gmra.mxu0 %v1561
    %v1563 = vpop.f32.mrf.mxu0
    %v1564 = vadd.f32 %v1535, %v1563
    %1565 = vdwg.mxu0
    %1566 = vmatpush.msra.mxu0 0.0
    %1567 = vmatpush.msra.mxu0 0.0
    %1568 = vmatpush.msra.mxu0 0.0
    %1569 = vmatpush.msra.mxu0 0.0
    %1570 = vmatpush.msra.mxu0 0.0
    %1571 = vmatpush.msra.mxu0 0.0
    %1572 = vmatpush.msra.mxu0 0.0
    %1573 = vmatpush.msra.mxu0 0.0
    %v1574 = vand.u32 %v138, 4294901760
    %1575 = vmatpush.msra.mxu0 %v1574
    %v1576 = vand.u32 %v130, 4294901760
    %1577 = vmatpush.msra.mxu0 %v1576
    %v1578 = vand.u32 %v122, 4294901760
    %1579 = vmatpush.msra.mxu0 %v1578
    %v1580 = vand.u32 %v114, 4294901760
    %1581 = vmatpush.msra.mxu0 %v1580
    %v1582 = vand.u32 %v106, 4294901760
    %1583 = vmatpush.msra.mxu0 %v1582
    %v1584 = vand.u32 %v98, 4294901760
    %1585 = vmatpush.msra.mxu0 %v1584
    %v1586 = vand.u32 %v90, 4294901760
    %1587 = vmatpush.msra.mxu0 %v1586
    %v1588 = vand.u32 %v82, 4294901760
    %1589 = vmatpush.msra.mxu0 %v1588
    %v1590 = vand.u32 %v142, 4294901760
    %v1591 = vsub.f32 %v142, %v1590
    %v1592 = vand.u32 %v1591, 4294901760
    %v1593 = vsub.f32 %v1591, %v1592
    %v1594 = vand.u32 %v1593, 4294901760
    %1595 = vmatmul.f32.gmra.mxu0 %v1594
    %v1596 = vpop.f32.mrf.mxu0
    %v1597 = vadd.f32 0.0, %v1596
    %1598 = vdwg.mxu0
    %1599 = vmatpush.msra.mxu0 0.0
    %1600 = vmatpush.msra.mxu0 0.0
    %1601 = vmatpush.msra.mxu0 0.0
    %1602 = vmatpush.msra.mxu0 0.0
    %1603 = vmatpush.msra.mxu0 0.0
    %1604 = vmatpush.msra.mxu0 0.0
    %1605 = vmatpush.msra.mxu0 0.0
    %1606 = vmatpush.msra.mxu0 0.0
    %v1607 = vand.u32 %v138, 4294901760
    %v1608 = vsub.f32 %v138, %v1607
    %v1609 = vand.u32 %v1608, 4294901760
    %v1610 = vsub.f32 %v1608, %v1609
    %v1611 = vand.u32 %v1610, 4294901760
    %1612 = vmatpush.msra.mxu0 %v1611
    %v1613 = vand.u32 %v130, 4294901760
    %v1614 = vsub.f32 %v130, %v1613
    %v1615 = vand.u32 %v1614, 4294901760
    %v1616 = vsub.f32 %v1614, %v1615
    %v1617 = vand.u32 %v1616, 4294901760
    %1618 = vmatpush.msra.mxu0 %v1617
    %v1619 = vand.u32 %v122, 4294901760
    %v1620 = vsub.f32 %v122, %v1619
    %v1621 = vand.u32 %v1620, 4294901760
    %v1622 = vsub.f32 %v1620, %v1621
    %v1623 = vand.u32 %v1622, 4294901760
    %1624 = vmatpush.msra.mxu0 %v1623
    %v1625 = vand.u32 %v114, 4294901760
    %v1626 = vsub.f32 %v114, %v1625
    %v1627 = vand.u32 %v1626, 4294901760
    %v1628 = vsub.f32 %v1626, %v1627
    %v1629 = vand.u32 %v1628, 4294901760
    %1630 = vmatpush.msra.mxu0 %v1629
    %v1631 = vand.u32 %v106, 4294901760
    %v1632 = vsub.f32 %v106, %v1631
    %v1633 = vand.u32 %v1632, 4294901760
    %v1634 = vsub.f32 %v1632, %v1633
    %v1635 = vand.u32 %v1634, 4294901760
    %1636 = vmatpush.msra.mxu0 %v1635
    %v1637 = vand.u32 %v98, 4294901760
    %v1638 = vsub.f32 %v98, %v1637
    %v1639 = vand.u32 %v1638, 4294901760
    %v1640 = vsub.f32 %v1638, %v1639
    %v1641 = vand.u32 %v1640, 4294901760
    %1642 = vmatpush.msra.mxu0 %v1641
    %v1643 = vand.u32 %v90, 4294901760
    %v1644 = vsub.f32 %v90, %v1643
    %v1645 = vand.u32 %v1644, 4294901760
    %v1646 = vsub.f32 %v1644, %v1645
    %v1647 = vand.u32 %v1646, 4294901760
    %1648 = vmatpush.msra.mxu0 %v1647
    %v1649 = vand.u32 %v82, 4294901760
    %v1650 = vsub.f32 %v82, %v1649
    %v1651 = vand.u32 %v1650, 4294901760
    %v1652 = vsub.f32 %v1650, %v1651
    %v1653 = vand.u32 %v1652, 4294901760
    %1654 = vmatpush.msra.mxu0 %v1653
    %v1655 = vand.u32 %v142, 4294901760
    %1656 = vmatmul.f32.gmra.mxu0 %v1655
    %v1657 = vpop.f32.mrf.mxu0
    %v1658 = vadd.f32 %v1597, %v1657
    %1659 = vdwg.mxu0
    %1660 = vmatpush.msra.mxu0 0.0
    %1661 = vmatpush.msra.mxu0 0.0
    %1662 = vmatpush.msra.mxu0 0.0
    %1663 = vmatpush.msra.mxu0 0.0
    %1664 = vmatpush.msra.mxu0 0.0
    %1665 = vmatpush.msra.mxu0 0.0
    %1666 = vmatpush.msra.mxu0 0.0
    %1667 = vmatpush.msra.mxu0 0.0
    %v1668 = vand.u32 %v138, 4294901760
    %v1669 = vsub.f32 %v138, %v1668
    %1670 = vmatpush.msra.mxu0 %v1669
    %v1671 = vand.u32 %v130, 4294901760
    %v1672 = vsub.f32 %v130, %v1671
    %1673 = vmatpush.msra.mxu0 %v1672
    %v1674 = vand.u32 %v122, 4294901760
    %v1675 = vsub.f32 %v122, %v1674
    %1676 = vmatpush.msra.mxu0 %v1675
    %v1677 = vand.u32 %v114, 4294901760
    %v1678 = vsub.f32 %v114, %v1677
    %1679 = vmatpush.msra.mxu0 %v1678
    %v1680 = vand.u32 %v106, 4294901760
    %v1681 = vsub.f32 %v106, %v1680
    %1682 = vmatpush.msra.mxu0 %v1681
    %v1683 = vand.u32 %v98, 4294901760
    %v1684 = vsub.f32 %v98, %v1683
    %1685 = vmatpush.msra.mxu0 %v1684
    %v1686 = vand.u32 %v90, 4294901760
    %v1687 = vsub.f32 %v90, %v1686
    %1688 = vmatpush.msra.mxu0 %v1687
    %v1689 = vand.u32 %v82, 4294901760
    %v1690 = vsub.f32 %v82, %v1689
    %1691 = vmatpush.msra.mxu0 %v1690
    %v1692 = vand.u32 %v142, 4294901760
    %v1693 = vsub.f32 %v142, %v1692
    %1694 = vmatmul.f32.gmra.mxu0 %v1693
    %v1695 = vpop.f32.mrf.mxu0
    %v1696 = vadd.f32 %v1658, %v1695
    %1697 = vdwg.mxu0
    %1698 = vmatpush.msra.mxu0 0.0
    %1699 = vmatpush.msra.mxu0 0.0
    %1700 = vmatpush.msra.mxu0 0.0
    %1701 = vmatpush.msra.mxu0 0.0
    %1702 = vmatpush.msra.mxu0 0.0
    %1703 = vmatpush.msra.mxu0 0.0
    %1704 = vmatpush.msra.mxu0 0.0
    %1705 = vmatpush.msra.mxu0 0.0
    %v1706 = vand.u32 %v138, 4294901760
    %1707 = vmatpush.msra.mxu0 %v1706
    %v1708 = vand.u32 %v130, 4294901760
    %1709 = vmatpush.msra.mxu0 %v1708
    %v1710 = vand.u32 %v122, 4294901760
    %1711 = vmatpush.msra.mxu0 %v1710
    %v1712 = vand.u32 %v114, 4294901760
    %1713 = vmatpush.msra.mxu0 %v1712
    %v1714 = vand.u32 %v106, 4294901760
    %1715 = vmatpush.msra.mxu0 %v1714
    %v1716 = vand.u32 %v98, 4294901760
    %1717 = vmatpush.msra.mxu0 %v1716
    %v1718 = vand.u32 %v90, 4294901760
    %1719 = vmatpush.msra.mxu0 %v1718
    %v1720 = vand.u32 %v82, 4294901760
    %1721 = vmatpush.msra.mxu0 %v1720
    %v1722 = vand.u32 %v142, 4294901760
    %v1723 = vsub.f32 %v142, %v1722
    %v1724 = vand.u32 %v1723, 4294901760
    %1725 = vmatmul.f32.gmra.mxu0 %v1724
    %v1726 = vpop.f32.mrf.mxu0
    %v1727 = vadd.f32 %v1696, %v1726
    %1728 = vdwg.mxu0
    %1729 = vmatpush.msra.mxu0 0.0
    %1730 = vmatpush.msra.mxu0 0.0
    %1731 = vmatpush.msra.mxu0 0.0
    %1732 = vmatpush.msra.mxu0 0.0
    %1733 = vmatpush.msra.mxu0 0.0
    %1734 = vmatpush.msra.mxu0 0.0
    %1735 = vmatpush.msra.mxu0 0.0
    %1736 = vmatpush.msra.mxu0 0.0
    %v1737 = vand.u32 %v138, 4294901760
    %v1738 = vsub.f32 %v138, %v1737
    %v1739 = vand.u32 %v1738, 4294901760
    %1740 = vmatpush.msra.mxu0 %v1739
    %v1741 = vand.u32 %v130, 4294901760
    %v1742 = vsub.f32 %v130, %v1741
    %v1743 = vand.u32 %v1742, 4294901760
    %1744 = vmatpush.msra.mxu0 %v1743
    %v1745 = vand.u32 %v122, 4294901760
    %v1746 = vsub.f32 %v122, %v1745
    %v1747 = vand.u32 %v1746, 4294901760
    %1748 = vmatpush.msra.mxu0 %v1747
    %v1749 = vand.u32 %v114, 4294901760
    %v1750 = vsub.f32 %v114, %v1749
    %v1751 = vand.u32 %v1750, 4294901760
    %1752 = vmatpush.msra.mxu0 %v1751
    %v1753 = vand.u32 %v106, 4294901760
    %v1754 = vsub.f32 %v106, %v1753
    %v1755 = vand.u32 %v1754, 4294901760
    %1756 = vmatpush.msra.mxu0 %v1755
    %v1757 = vand.u32 %v98, 4294901760
    %v1758 = vsub.f32 %v98, %v1757
    %v1759 = vand.u32 %v1758, 4294901760
    %1760 = vmatpush.msra.mxu0 %v1759
    %v1761 = vand.u32 %v90, 4294901760
    %v1762 = vsub.f32 %v90, %v1761
    %v1763 = vand.u32 %v1762, 4294901760
    %1764 = vmatpush.msra.mxu0 %v1763
    %v1765 = vand.u32 %v82, 4294901760
    %v1766 = vsub.f32 %v82, %v1765
    %v1767 = vand.u32 %v1766, 4294901760
    %1768 = vmatpush.msra.mxu0 %v1767
    %v1769 = vand.u32 %v142, 4294901760
    %1770 = vmatmul.f32.gmra.mxu0 %v1769
    %v1771 = vpop.f32.mrf.mxu0
    %v1772 = vadd.f32 %v1727, %v1771
    %1773 = vdwg.mxu0
    %1774 = vmatpush.msra.mxu0 0.0
    %1775 = vmatpush.msra.mxu0 0.0
    %1776 = vmatpush.msra.mxu0 0.0
    %1777 = vmatpush.msra.mxu0 0.0
    %1778 = vmatpush.msra.mxu0 0.0
    %1779 = vmatpush.msra.mxu0 0.0
    %1780 = vmatpush.msra.mxu0 0.0
    %1781 = vmatpush.msra.mxu0 0.0
    %v1782 = vand.u32 %v138, 4294901760
    %1783 = vmatpush.msra.mxu0 %v1782
    %v1784 = vand.u32 %v130, 4294901760
    %1785 = vmatpush.msra.mxu0 %v1784
    %v1786 = vand.u32 %v122, 4294901760
    %1787 = vmatpush.msra.mxu0 %v1786
    %v1788 = vand.u32 %v114, 4294901760
    %1789 = vmatpush.msra.mxu0 %v1788
    %v1790 = vand.u32 %v106, 4294901760
    %1791 = vmatpush.msra.mxu0 %v1790
    %v1792 = vand.u32 %v98, 4294901760
    %1793 = vmatpush.msra.mxu0 %v1792
    %v1794 = vand.u32 %v90, 4294901760
    %1795 = vmatpush.msra.mxu0 %v1794
    %v1796 = vand.u32 %v82, 4294901760
    %1797 = vmatpush.msra.mxu0 %v1796
    %v1798 = vand.u32 %v142, 4294901760
    %1799 = vmatmul.f32.gmra.mxu0 %v1798
    %v1800 = vpop.f32.mrf.mxu0
    %v1801 = vadd.f32 %v1772, %v1800
    %1802 = vdwg.mxu0
    %1803 = vmatpush.msra.mxu0 0.0
    %1804 = vmatpush.msra.mxu0 0.0
    %1805 = vmatpush.msra.mxu0 0.0
    %1806 = vmatpush.msra.mxu0 0.0
    %1807 = vmatpush.msra.mxu0 0.0
    %1808 = vmatpush.msra.mxu0 0.0
    %1809 = vmatpush.msra.mxu0 0.0
    %1810 = vmatpush.msra.mxu0 0.0
    %v1811 = vand.u32 %v139, 4294901760
    %1812 = vmatpush.msra.mxu0 %v1811
    %v1813 = vand.u32 %v131, 4294901760
    %1814 = vmatpush.msra.mxu0 %v1813
    %v1815 = vand.u32 %v123, 4294901760
    %1816 = vmatpush.msra.mxu0 %v1815
    %v1817 = vand.u32 %v115, 4294901760
    %1818 = vmatpush.msra.mxu0 %v1817
    %v1819 = vand.u32 %v107, 4294901760
    %1820 = vmatpush.msra.mxu0 %v1819
    %v1821 = vand.u32 %v99, 4294901760
    %1822 = vmatpush.msra.mxu0 %v1821
    %v1823 = vand.u32 %v91, 4294901760
    %1824 = vmatpush.msra.mxu0 %v1823
    %v1825 = vand.u32 %v83, 4294901760
    %1826 = vmatpush.msra.mxu0 %v1825
    %v1827 = vand.u32 %v142, 4294901760
    %v1828 = vsub.f32 %v142, %v1827
    %v1829 = vand.u32 %v1828, 4294901760
    %v1830 = vsub.f32 %v1828, %v1829
    %v1831 = vand.u32 %v1830, 4294901760
    %1832 = vmatmul.f32.gmra.mxu0 %v1831
    %v1833 = vpop.f32.mrf.mxu0
    %v1834 = vadd.f32 0.0, %v1833
    %1835 = vdwg.mxu0
    %1836 = vmatpush.msra.mxu0 0.0
    %1837 = vmatpush.msra.mxu0 0.0
    %1838 = vmatpush.msra.mxu0 0.0
    %1839 = vmatpush.msra.mxu0 0.0
    %1840 = vmatpush.msra.mxu0 0.0
    %1841 = vmatpush.msra.mxu0 0.0
    %1842 = vmatpush.msra.mxu0 0.0
    %1843 = vmatpush.msra.mxu0 0.0
    %v1844 = vand.u32 %v139, 4294901760
    %v1845 = vsub.f32 %v139, %v1844
    %v1846 = vand.u32 %v1845, 4294901760
    %v1847 = vsub.f32 %v1845, %v1846
    %v1848 = vand.u32 %v1847, 4294901760
    %1849 = vmatpush.msra.mxu0 %v1848
    %v1850 = vand.u32 %v131, 4294901760
    %v1851 = vsub.f32 %v131, %v1850
    %v1852 = vand.u32 %v1851, 4294901760
    %v1853 = vsub.f32 %v1851, %v1852
    %v1854 = vand.u32 %v1853, 4294901760
    %1855 = vmatpush.msra.mxu0 %v1854
    %v1856 = vand.u32 %v123, 4294901760
    %v1857 = vsub.f32 %v123, %v1856
    %v1858 = vand.u32 %v1857, 4294901760
    %v1859 = vsub.f32 %v1857, %v1858
    %v1860 = vand.u32 %v1859, 4294901760
    %1861 = vmatpush.msra.mxu0 %v1860
    %v1862 = vand.u32 %v115, 4294901760
    %v1863 = vsub.f32 %v115, %v1862
    %v1864 = vand.u32 %v1863, 4294901760
    %v1865 = vsub.f32 %v1863, %v1864
    %v1866 = vand.u32 %v1865, 4294901760
    %1867 = vmatpush.msra.mxu0 %v1866
    %v1868 = vand.u32 %v107, 4294901760
    %v1869 = vsub.f32 %v107, %v1868
    %v1870 = vand.u32 %v1869, 4294901760
    %v1871 = vsub.f32 %v1869, %v1870
    %v1872 = vand.u32 %v1871, 4294901760
    %1873 = vmatpush.msra.mxu0 %v1872
    %v1874 = vand.u32 %v99, 4294901760
    %v1875 = vsub.f32 %v99, %v1874
    %v1876 = vand.u32 %v1875, 4294901760
    %v1877 = vsub.f32 %v1875, %v1876
    %v1878 = vand.u32 %v1877, 4294901760
    %1879 = vmatpush.msra.mxu0 %v1878
    %v1880 = vand.u32 %v91, 4294901760
    %v1881 = vsub.f32 %v91, %v1880
    %v1882 = vand.u32 %v1881, 4294901760
    %v1883 = vsub.f32 %v1881, %v1882
    %v1884 = vand.u32 %v1883, 4294901760
    %1885 = vmatpush.msra.mxu0 %v1884
    %v1886 = vand.u32 %v83, 4294901760
    %v1887 = vsub.f32 %v83, %v1886
    %v1888 = vand.u32 %v1887, 4294901760
    %v1889 = vsub.f32 %v1887, %v1888
    %v1890 = vand.u32 %v1889, 4294901760
    %1891 = vmatpush.msra.mxu0 %v1890
    %v1892 = vand.u32 %v142, 4294901760
    %1893 = vmatmul.f32.gmra.mxu0 %v1892
    %v1894 = vpop.f32.mrf.mxu0
    %v1895 = vadd.f32 %v1834, %v1894
    %1896 = vdwg.mxu0
    %1897 = vmatpush.msra.mxu0 0.0
    %1898 = vmatpush.msra.mxu0 0.0
    %1899 = vmatpush.msra.mxu0 0.0
    %1900 = vmatpush.msra.mxu0 0.0
    %1901 = vmatpush.msra.mxu0 0.0
    %1902 = vmatpush.msra.mxu0 0.0
    %1903 = vmatpush.msra.mxu0 0.0
    %1904 = vmatpush.msra.mxu0 0.0
    %v1905 = vand.u32 %v139, 4294901760
    %v1906 = vsub.f32 %v139, %v1905
    %1907 = vmatpush.msra.mxu0 %v1906
    %v1908 = vand.u32 %v131, 4294901760
    %v1909 = vsub.f32 %v131, %v1908
    %1910 = vmatpush.msra.mxu0 %v1909
    %v1911 = vand.u32 %v123, 4294901760
    %v1912 = vsub.f32 %v123, %v1911
    %1913 = vmatpush.msra.mxu0 %v1912
    %v1914 = vand.u32 %v115, 4294901760
    %v1915 = vsub.f32 %v115, %v1914
    %1916 = vmatpush.msra.mxu0 %v1915
    %v1917 = vand.u32 %v107, 4294901760
    %v1918 = vsub.f32 %v107, %v1917
    %1919 = vmatpush.msra.mxu0 %v1918
    %v1920 = vand.u32 %v99, 4294901760
    %v1921 = vsub.f32 %v99, %v1920
    %1922 = vmatpush.msra.mxu0 %v1921
    %v1923 = vand.u32 %v91, 4294901760
    %v1924 = vsub.f32 %v91, %v1923
    %1925 = vmatpush.msra.mxu0 %v1924
    %v1926 = vand.u32 %v83, 4294901760
    %v1927 = vsub.f32 %v83, %v1926
    %1928 = vmatpush.msra.mxu0 %v1927
    %v1929 = vand.u32 %v142, 4294901760
    %v1930 = vsub.f32 %v142, %v1929
    %1931 = vmatmul.f32.gmra.mxu0 %v1930
    %v1932 = vpop.f32.mrf.mxu0
    %v1933 = vadd.f32 %v1895, %v1932
    %1934 = vdwg.mxu0
    %1935 = vmatpush.msra.mxu0 0.0
    %1936 = vmatpush.msra.mxu0 0.0
    %1937 = vmatpush.msra.mxu0 0.0
    %1938 = vmatpush.msra.mxu0 0.0
    %1939 = vmatpush.msra.mxu0 0.0
    %1940 = vmatpush.msra.mxu0 0.0
    %1941 = vmatpush.msra.mxu0 0.0
    %1942 = vmatpush.msra.mxu0 0.0
    %v1943 = vand.u32 %v139, 4294901760
    %1944 = vmatpush.msra.mxu0 %v1943
    %v1945 = vand.u32 %v131, 4294901760
    %1946 = vmatpush.msra.mxu0 %v1945
    %v1947 = vand.u32 %v123, 4294901760
    %1948 = vmatpush.msra.mxu0 %v1947
    %v1949 = vand.u32 %v115, 4294901760
    %1950 = vmatpush.msra.mxu0 %v1949
    %v1951 = vand.u32 %v107, 4294901760
    %1952 = vmatpush.msra.mxu0 %v1951
    %v1953 = vand.u32 %v99, 4294901760
    %1954 = vmatpush.msra.mxu0 %v1953
    %v1955 = vand.u32 %v91, 4294901760
    %1956 = vmatpush.msra.mxu0 %v1955
    %v1957 = vand.u32 %v83, 4294901760
    %1958 = vmatpush.msra.mxu0 %v1957
    %v1959 = vand.u32 %v142, 4294901760
    %v1960 = vsub.f32 %v142, %v1959
    %v1961 = vand.u32 %v1960, 4294901760
    %1962 = vmatmul.f32.gmra.mxu0 %v1961
    %v1963 = vpop.f32.mrf.mxu0
    %v1964 = vadd.f32 %v1933, %v1963
    %1965 = vdwg.mxu0
    %1966 = vmatpush.msra.mxu0 0.0
    %1967 = vmatpush.msra.mxu0 0.0
    %1968 = vmatpush.msra.mxu0 0.0
    %1969 = vmatpush.msra.mxu0 0.0
    %1970 = vmatpush.msra.mxu0 0.0
    %1971 = vmatpush.msra.mxu0 0.0
    %1972 = vmatpush.msra.mxu0 0.0
    %1973 = vmatpush.msra.mxu0 0.0
    %v1974 = vand.u32 %v139, 4294901760
    %v1975 = vsub.f32 %v139, %v1974
    %v1976 = vand.u32 %v1975, 4294901760
    %1977 = vmatpush.msra.mxu0 %v1976
    %v1978 = vand.u32 %v131, 4294901760
    %v1979 = vsub.f32 %v131, %v1978
    %v1980 = vand.u32 %v1979, 4294901760
    %1981 = vmatpush.msra.mxu0 %v1980
    %v1982 = vand.u32 %v123, 4294901760
    %v1983 = vsub.f32 %v123, %v1982
    %v1984 = vand.u32 %v1983, 4294901760
    %1985 = vmatpush.msra.mxu0 %v1984
    %v1986 = vand.u32 %v115, 4294901760
    %v1987 = vsub.f32 %v115, %v1986
    %v1988 = vand.u32 %v1987, 4294901760
    %1989 = vmatpush.msra.mxu0 %v1988
    %v1990 = vand.u32 %v107, 4294901760
    %v1991 = vsub.f32 %v107, %v1990
    %v1992 = vand.u32 %v1991, 4294901760
    %1993 = vmatpush.msra.mxu0 %v1992
    %v1994 = vand.u32 %v99, 4294901760
    %v1995 = vsub.f32 %v99, %v1994
    %v1996 = vand.u32 %v1995, 4294901760
    %1997 = vmatpush.msra.mxu0 %v1996
    %v1998 = vand.u32 %v91, 4294901760
    %v1999 = vsub.f32 %v91, %v1998
    %v2000 = vand.u32 %v1999, 4294901760
    %2001 = vmatpush.msra.mxu0 %v2000
    %v2002 = vand.u32 %v83, 4294901760
    %v2003 = vsub.f32 %v83, %v2002
    %v2004 = vand.u32 %v2003, 4294901760
    %2005 = vmatpush.msra.mxu0 %v2004
    %v2006 = vand.u32 %v142, 4294901760
    %2007 = vmatmul.f32.gmra.mxu0 %v2006
    %v2008 = vpop.f32.mrf.mxu0
    %v2009 = vadd.f32 %v1964, %v2008
    %2010 = vdwg.mxu0
    %2011 = vmatpush.msra.mxu0 0.0
    %2012 = vmatpush.msra.mxu0 0.0
    %2013 = vmatpush.msra.mxu0 0.0
    %2014 = vmatpush.msra.mxu0 0.0
    %2015 = vmatpush.msra.mxu0 0.0
    %2016 = vmatpush.msra.mxu0 0.0
    %2017 = vmatpush.msra.mxu0 0.0
    %2018 = vmatpush.msra.mxu0 0.0
    %v2019 = vand.u32 %v139, 4294901760
    %2020 = vmatpush.msra.mxu0 %v2019
    %v2021 = vand.u32 %v131, 4294901760
    %2022 = vmatpush.msra.mxu0 %v2021
    %v2023 = vand.u32 %v123, 4294901760
    %2024 = vmatpush.msra.mxu0 %v2023
    %v2025 = vand.u32 %v115, 4294901760
    %2026 = vmatpush.msra.mxu0 %v2025
    %v2027 = vand.u32 %v107, 4294901760
    %2028 = vmatpush.msra.mxu0 %v2027
    %v2029 = vand.u32 %v99, 4294901760
    %2030 = vmatpush.msra.mxu0 %v2029
    %v2031 = vand.u32 %v91, 4294901760
    %2032 = vmatpush.msra.mxu0 %v2031
    %v2033 = vand.u32 %v83, 4294901760
    %2034 = vmatpush.msra.mxu0 %v2033
    %v2035 = vand.u32 %v142, 4294901760
    %2036 = vmatmul.f32.gmra.mxu0 %v2035
    %v2037 = vpop.f32.mrf.mxu0
    %v2038 = vadd.f32 %v2009, %v2037
    %2039 = vdwg.mxu0
    %v2040 = vmul.f32 %v379, 0.03125
    %v2041 = vmul.f32 %v616, 0.03125
    %v2042 = vmul.f32 %v853, 0.03125
    %v2043 = vmul.f32 %v1090, 0.03125
    %v2044 = vmul.f32 %v1327, 0.03125
    %v2045 = vmul.f32 %v1564, 0.03125
    %v2046 = vmul.f32 %v1801, 0.03125
    %v2047 = vmul.f32 %v2038, 0.03125
    %v2048 = vld [vmem:[#allocation5] sm:$0xff]
    %v2049 = vld [vmem:[#allocation8] sm:$0xff]
    %v2050 = vld [vmem:[#allocation8 + $0x8] sm:$0xff]
    %v2051 = vld [vmem:[#allocation8 + $0x10] sm:$0xff]
    %v2052 = vld [vmem:[#allocation8 + $0x18] sm:$0xff]
    %v2053 = vld [vmem:[#allocation8 + $0x20] sm:$0xff]
    %v2054 = vld [vmem:[#allocation8 + $0x28] sm:$0xff]
    %v2055 = vld [vmem:[#allocation8 + $0x30] sm:$0xff]
    %v2056 = vld [vmem:[#allocation8 + $0x38] sm:$0xff]
    %vm2057 = vcmask 64512
    %v2059 = vsel %vm2057, %v2048, 0
    %2061 = vmatpush.msra.mxu0 0.0
    %2062 = vmatpush.msra.mxu0 0.0
    %2063 = vmatpush.msra.mxu0 0.0
    %2064 = vmatpush.msra.mxu0 0.0
    %2065 = vmatpush.msra.mxu0 0.0
    %2066 = vmatpush.msra.mxu0 0.0
    %2067 = vmatpush.msra.mxu0 0.0
    %2068 = vmatpush.msra.mxu0 0.0
    %2069 = vmatpush.msra.mxu0 0.0
    %2070 = vmatpush.msra.mxu0 0.0
    %2071 = vmatpush.msra.mxu0 0.0
    %2072 = vmatpush.msra.mxu0 0.0
    %2073 = vmatpush.msra.mxu0 0.0
    %2074 = vmatpush.msra.mxu0 0.0
    %2075 = vmatpush.msra.mxu0 0.0
    %v2076 = vand.u32 %v2049, 4294901760
    %2077 = vmatpush.msra.mxu0 %v2076
    %v2078 = vand.u32 %v2059, 4294901760
    %v2079 = vsub.f32 %v2059, %v2078
    %v2080 = vand.u32 %v2079, 4294901760
    %v2081 = vsub.f32 %v2079, %v2080
    %v2082 = vand.u32 %v2081, 4294901760
    %2083 = vmatmul.f32.gmra.mxu0 %v2082
    %v2084 = vpop.f32.mrf.mxu0
    %v2085 = vadd.f32 0.0, %v2084
    %2086 = vdwg.mxu0
    %2087 = vmatpush.msra.mxu0 0.0
    %2088 = vmatpush.msra.mxu0 0.0
    %2089 = vmatpush.msra.mxu0 0.0
    %2090 = vmatpush.msra.mxu0 0.0
    %2091 = vmatpush.msra.mxu0 0.0
    %2092 = vmatpush.msra.mxu0 0.0
    %2093 = vmatpush.msra.mxu0 0.0
    %2094 = vmatpush.msra.mxu0 0.0
    %2095 = vmatpush.msra.mxu0 0.0
    %2096 = vmatpush.msra.mxu0 0.0
    %2097 = vmatpush.msra.mxu0 0.0
    %2098 = vmatpush.msra.mxu0 0.0
    %2099 = vmatpush.msra.mxu0 0.0
    %2100 = vmatpush.msra.mxu0 0.0
    %2101 = vmatpush.msra.mxu0 0.0
    %v2102 = vand.u32 %v2049, 4294901760
    %v2103 = vsub.f32 %v2049, %v2102
    %v2104 = vand.u32 %v2103, 4294901760
    %v2105 = vsub.f32 %v2103, %v2104
    %v2106 = vand.u32 %v2105, 4294901760
    %2107 = vmatpush.msra.mxu0 %v2106
    %v2108 = vand.u32 %v2059, 4294901760
    %2109 = vmatmul.f32.gmra.mxu0 %v2108
    %v2110 = vpop.f32.mrf.mxu0
    %v2111 = vadd.f32 %v2085, %v2110
    %2112 = vdwg.mxu0
    %2113 = vmatpush.msra.mxu0 0.0
    %2114 = vmatpush.msra.mxu0 0.0
    %2115 = vmatpush.msra.mxu0 0.0
    %2116 = vmatpush.msra.mxu0 0.0
    %2117 = vmatpush.msra.mxu0 0.0
    %2118 = vmatpush.msra.mxu0 0.0
    %2119 = vmatpush.msra.mxu0 0.0
    %2120 = vmatpush.msra.mxu0 0.0
    %2121 = vmatpush.msra.mxu0 0.0
    %2122 = vmatpush.msra.mxu0 0.0
    %2123 = vmatpush.msra.mxu0 0.0
    %2124 = vmatpush.msra.mxu0 0.0
    %2125 = vmatpush.msra.mxu0 0.0
    %2126 = vmatpush.msra.mxu0 0.0
    %2127 = vmatpush.msra.mxu0 0.0
    %v2128 = vand.u32 %v2049, 4294901760
    %v2129 = vsub.f32 %v2049, %v2128
    %2130 = vmatpush.msra.mxu0 %v2129
    %v2131 = vand.u32 %v2059, 4294901760
    %v2132 = vsub.f32 %v2059, %v2131
    %2133 = vmatmul.f32.gmra.mxu0 %v2132
    %v2134 = vpop.f32.mrf.mxu0
    %v2135 = vadd.f32 %v2111, %v2134
    %2136 = vdwg.mxu0
    %2137 = vmatpush.msra.mxu0 0.0
    %2138 = vmatpush.msra.mxu0 0.0
    %2139 = vmatpush.msra.mxu0 0.0
    %2140 = vmatpush.msra.mxu0 0.0
    %2141 = vmatpush.msra.mxu0 0.0
    %2142 = vmatpush.msra.mxu0 0.0
    %2143 = vmatpush.msra.mxu0 0.0
    %2144 = vmatpush.msra.mxu0 0.0
    %2145 = vmatpush.msra.mxu0 0.0
    %2146 = vmatpush.msra.mxu0 0.0
    %2147 = vmatpush.msra.mxu0 0.0
    %2148 = vmatpush.msra.mxu0 0.0
    %2149 = vmatpush.msra.mxu0 0.0
    %2150 = vmatpush.msra.mxu0 0.0
    %2151 = vmatpush.msra.mxu0 0.0
    %v2152 = vand.u32 %v2049, 4294901760
    %2153 = vmatpush.msra.mxu0 %v2152
    %v2154 = vand.u32 %v2059, 4294901760
    %v2155 = vsub.f32 %v2059, %v2154
    %v2156 = vand.u32 %v2155, 4294901760
    %2157 = vmatmul.f32.gmra.mxu0 %v2156
    %v2158 = vpop.f32.mrf.mxu0
    %v2159 = vadd.f32 %v2135, %v2158
    %2160 = vdwg.mxu0
    %2161 = vmatpush.msra.mxu0 0.0
    %2162 = vmatpush.msra.mxu0 0.0
    %2163 = vmatpush.msra.mxu0 0.0
    %2164 = vmatpush.msra.mxu0 0.0
    %2165 = vmatpush.msra.mxu0 0.0
    %2166 = vmatpush.msra.mxu0 0.0
    %2167 = vmatpush.msra.mxu0 0.0
    %2168 = vmatpush.msra.mxu0 0.0
    %2169 = vmatpush.msra.mxu0 0.0
    %2170 = vmatpush.msra.mxu0 0.0
    %2171 = vmatpush.msra.mxu0 0.0
    %2172 = vmatpush.msra.mxu0 0.0
    %2173 = vmatpush.msra.mxu0 0.0
    %2174 = vmatpush.msra.mxu0 0.0
    %2175 = vmatpush.msra.mxu0 0.0
    %v2176 = vand.u32 %v2049, 4294901760
    %v2177 = vsub.f32 %v2049, %v2176
    %v2178 = vand.u32 %v2177, 4294901760
    %2179 = vmatpush.msra.mxu0 %v2178
    %v2180 = vand.u32 %v2059, 4294901760
    %2181 = vmatmul.f32.gmra.mxu0 %v2180
    %v2182 = vpop.f32.mrf.mxu0
    %v2183 = vadd.f32 %v2159, %v2182
    %2184 = vdwg.mxu0
    %2185 = vmatpush.msra.mxu0 0.0
    %2186 = vmatpush.msra.mxu0 0.0
    %2187 = vmatpush.msra.mxu0 0.0
    %2188 = vmatpush.msra.mxu0 0.0
    %2189 = vmatpush.msra.mxu0 0.0
    %2190 = vmatpush.msra.mxu0 0.0
    %2191 = vmatpush.msra.mxu0 0.0
    %2192 = vmatpush.msra.mxu0 0.0
    %2193 = vmatpush.msra.mxu0 0.0
    %2194 = vmatpush.msra.mxu0 0.0
    %2195 = vmatpush.msra.mxu0 0.0
    %2196 = vmatpush.msra.mxu0 0.0
    %2197 = vmatpush.msra.mxu0 0.0
    %2198 = vmatpush.msra.mxu0 0.0
    %2199 = vmatpush.msra.mxu0 0.0
    %v2200 = vand.u32 %v2049, 4294901760
    %2201 = vmatpush.msra.mxu0 %v2200
    %v2202 = vand.u32 %v2059, 4294901760
    %2203 = vmatmul.f32.gmra.mxu0 %v2202
    %v2204 = vpop.f32.mrf.mxu0
    %v2205 = vadd.f32 %v2183, %v2204
    %2206 = vdwg.mxu0
    %2207 = vmatpush.msra.mxu0 0.0
    %2208 = vmatpush.msra.mxu0 0.0
    %2209 = vmatpush.msra.mxu0 0.0
    %2210 = vmatpush.msra.mxu0 0.0
    %2211 = vmatpush.msra.mxu0 0.0
    %2212 = vmatpush.msra.mxu0 0.0
    %2213 = vmatpush.msra.mxu0 0.0
    %2214 = vmatpush.msra.mxu0 0.0
    %2215 = vmatpush.msra.mxu0 0.0
    %2216 = vmatpush.msra.mxu0 0.0
    %2217 = vmatpush.msra.mxu0 0.0
    %2218 = vmatpush.msra.mxu0 0.0
    %2219 = vmatpush.msra.mxu0 0.0
    %2220 = vmatpush.msra.mxu0 0.0
    %2221 = vmatpush.msra.mxu0 0.0
    %v2222 = vand.u32 %v2050, 4294901760
    %2223 = vmatpush.msra.mxu0 %v2222
    %v2224 = vand.u32 %v2059, 4294901760
    %v2225 = vsub.f32 %v2059, %v2224
    %v2226 = vand.u32 %v2225, 4294901760
    %v2227 = vsub.f32 %v2225, %v2226
    %v2228 = vand.u32 %v2227, 4294901760
    %2229 = vmatmul.f32.gmra.mxu0 %v2228
    %v2230 = vpop.f32.mrf.mxu0
    %v2231 = vadd.f32 0.0, %v2230
    %2232 = vdwg.mxu0
    %2233 = vmatpush.msra.mxu0 0.0
    %2234 = vmatpush.msra.mxu0 0.0
    %2235 = vmatpush.msra.mxu0 0.0
    %2236 = vmatpush.msra.mxu0 0.0
    %2237 = vmatpush.msra.mxu0 0.0
    %2238 = vmatpush.msra.mxu0 0.0
    %2239 = vmatpush.msra.mxu0 0.0
    %2240 = vmatpush.msra.mxu0 0.0
    %2241 = vmatpush.msra.mxu0 0.0
    %2242 = vmatpush.msra.mxu0 0.0
    %2243 = vmatpush.msra.mxu0 0.0
    %2244 = vmatpush.msra.mxu0 0.0
    %2245 = vmatpush.msra.mxu0 0.0
    %2246 = vmatpush.msra.mxu0 0.0
    %2247 = vmatpush.msra.mxu0 0.0
    %v2248 = vand.u32 %v2050, 4294901760
    %v2249 = vsub.f32 %v2050, %v2248
    %v2250 = vand.u32 %v2249, 4294901760
    %v2251 = vsub.f32 %v2249, %v2250
    %v2252 = vand.u32 %v2251, 4294901760
    %2253 = vmatpush.msra.mxu0 %v2252
    %v2254 = vand.u32 %v2059, 4294901760
    %2255 = vmatmul.f32.gmra.mxu0 %v2254
    %v2256 = vpop.f32.mrf.mxu0
    %v2257 = vadd.f32 %v2231, %v2256
    %2258 = vdwg.mxu0
    %2259 = vmatpush.msra.mxu0 0.0
    %2260 = vmatpush.msra.mxu0 0.0
    %2261 = vmatpush.msra.mxu0 0.0
    %2262 = vmatpush.msra.mxu0 0.0
    %2263 = vmatpush.msra.mxu0 0.0
    %2264 = vmatpush.msra.mxu0 0.0
    %2265 = vmatpush.msra.mxu0 0.0
    %2266 = vmatpush.msra.mxu0 0.0
    %2267 = vmatpush.msra.mxu0 0.0
    %2268 = vmatpush.msra.mxu0 0.0
    %2269 = vmatpush.msra.mxu0 0.0
    %2270 = vmatpush.msra.mxu0 0.0
    %2271 = vmatpush.msra.mxu0 0.0
    %2272 = vmatpush.msra.mxu0 0.0
    %2273 = vmatpush.msra.mxu0 0.0
    %v2274 = vand.u32 %v2050, 4294901760
    %v2275 = vsub.f32 %v2050, %v2274
    %2276 = vmatpush.msra.mxu0 %v2275
    %v2277 = vand.u32 %v2059, 4294901760
    %v2278 = vsub.f32 %v2059, %v2277
    %2279 = vmatmul.f32.gmra.mxu0 %v2278
    %v2280 = vpop.f32.mrf.mxu0
    %v2281 = vadd.f32 %v2257, %v2280
    %2282 = vdwg.mxu0
    %2283 = vmatpush.msra.mxu0 0.0
    %2284 = vmatpush.msra.mxu0 0.0
    %2285 = vmatpush.msra.mxu0 0.0
    %2286 = vmatpush.msra.mxu0 0.0
    %2287 = vmatpush.msra.mxu0 0.0
    %2288 = vmatpush.msra.mxu0 0.0
    %2289 = vmatpush.msra.mxu0 0.0
    %2290 = vmatpush.msra.mxu0 0.0
    %2291 = vmatpush.msra.mxu0 0.0
    %2292 = vmatpush.msra.mxu0 0.0
    %2293 = vmatpush.msra.mxu0 0.0
    %2294 = vmatpush.msra.mxu0 0.0
    %2295 = vmatpush.msra.mxu0 0.0
    %2296 = vmatpush.msra.mxu0 0.0
    %2297 = vmatpush.msra.mxu0 0.0
    %v2298 = vand.u32 %v2050, 4294901760
    %2299 = vmatpush.msra.mxu0 %v2298
    %v2300 = vand.u32 %v2059, 4294901760
    %v2301 = vsub.f32 %v2059, %v2300
    %v2302 = vand.u32 %v2301, 4294901760
    %2303 = vmatmul.f32.gmra.mxu0 %v2302
    %v2304 = vpop.f32.mrf.mxu0
    %v2305 = vadd.f32 %v2281, %v2304
    %2306 = vdwg.mxu0
    %2307 = vmatpush.msra.mxu0 0.0
    %2308 = vmatpush.msra.mxu0 0.0
    %2309 = vmatpush.msra.mxu0 0.0
    %2310 = vmatpush.msra.mxu0 0.0
    %2311 = vmatpush.msra.mxu0 0.0
    %2312 = vmatpush.msra.mxu0 0.0
    %2313 = vmatpush.msra.mxu0 0.0
    %2314 = vmatpush.msra.mxu0 0.0
    %2315 = vmatpush.msra.mxu0 0.0
    %2316 = vmatpush.msra.mxu0 0.0
    %2317 = vmatpush.msra.mxu0 0.0
    %2318 = vmatpush.msra.mxu0 0.0
    %2319 = vmatpush.msra.mxu0 0.0
    %2320 = vmatpush.msra.mxu0 0.0
    %2321 = vmatpush.msra.mxu0 0.0
    %v2322 = vand.u32 %v2050, 4294901760
    %v2323 = vsub.f32 %v2050, %v2322
    %v2324 = vand.u32 %v2323, 4294901760
    %2325 = vmatpush.msra.mxu0 %v2324
    %v2326 = vand.u32 %v2059, 4294901760
    %2327 = vmatmul.f32.gmra.mxu0 %v2326
    %v2328 = vpop.f32.mrf.mxu0
    %v2329 = vadd.f32 %v2305, %v2328
    %2330 = vdwg.mxu0
    %2331 = vmatpush.msra.mxu0 0.0
    %2332 = vmatpush.msra.mxu0 0.0
    %2333 = vmatpush.msra.mxu0 0.0
    %2334 = vmatpush.msra.mxu0 0.0
    %2335 = vmatpush.msra.mxu0 0.0
    %2336 = vmatpush.msra.mxu0 0.0
    %2337 = vmatpush.msra.mxu0 0.0
    %2338 = vmatpush.msra.mxu0 0.0
    %2339 = vmatpush.msra.mxu0 0.0
    %2340 = vmatpush.msra.mxu0 0.0
    %2341 = vmatpush.msra.mxu0 0.0
    %2342 = vmatpush.msra.mxu0 0.0
    %2343 = vmatpush.msra.mxu0 0.0
    %2344 = vmatpush.msra.mxu0 0.0
    %2345 = vmatpush.msra.mxu0 0.0
    %v2346 = vand.u32 %v2050, 4294901760
    %2347 = vmatpush.msra.mxu0 %v2346
    %v2348 = vand.u32 %v2059, 4294901760
    %2349 = vmatmul.f32.gmra.mxu0 %v2348
    %v2350 = vpop.f32.mrf.mxu0
    %v2351 = vadd.f32 %v2329, %v2350
    %2352 = vdwg.mxu0
    %2353 = vmatpush.msra.mxu0 0.0
    %2354 = vmatpush.msra.mxu0 0.0
    %2355 = vmatpush.msra.mxu0 0.0
    %2356 = vmatpush.msra.mxu0 0.0
    %2357 = vmatpush.msra.mxu0 0.0
    %2358 = vmatpush.msra.mxu0 0.0
    %2359 = vmatpush.msra.mxu0 0.0
    %2360 = vmatpush.msra.mxu0 0.0
    %2361 = vmatpush.msra.mxu0 0.0
    %2362 = vmatpush.msra.mxu0 0.0
    %2363 = vmatpush.msra.mxu0 0.0
    %2364 = vmatpush.msra.mxu0 0.0
    %2365 = vmatpush.msra.mxu0 0.0
    %2366 = vmatpush.msra.mxu0 0.0
    %2367 = vmatpush.msra.mxu0 0.0
    %v2368 = vand.u32 %v2051, 4294901760
    %2369 = vmatpush.msra.mxu0 %v2368
    %v2370 = vand.u32 %v2059, 4294901760
    %v2371 = vsub.f32 %v2059, %v2370
    %v2372 = vand.u32 %v2371, 4294901760
    %v2373 = vsub.f32 %v2371, %v2372
    %v2374 = vand.u32 %v2373, 4294901760
    %2375 = vmatmul.f32.gmra.mxu0 %v2374
    %v2376 = vpop.f32.mrf.mxu0
    %v2377 = vadd.f32 0.0, %v2376
    %2378 = vdwg.mxu0
    %2379 = vmatpush.msra.mxu0 0.0
    %2380 = vmatpush.msra.mxu0 0.0
    %2381 = vmatpush.msra.mxu0 0.0
    %2382 = vmatpush.msra.mxu0 0.0
    %2383 = vmatpush.msra.mxu0 0.0
    %2384 = vmatpush.msra.mxu0 0.0
    %2385 = vmatpush.msra.mxu0 0.0
    %2386 = vmatpush.msra.mxu0 0.0
    %2387 = vmatpush.msra.mxu0 0.0
    %2388 = vmatpush.msra.mxu0 0.0
    %2389 = vmatpush.msra.mxu0 0.0
    %2390 = vmatpush.msra.mxu0 0.0
    %2391 = vmatpush.msra.mxu0 0.0
    %2392 = vmatpush.msra.mxu0 0.0
    %2393 = vmatpush.msra.mxu0 0.0
    %v2394 = vand.u32 %v2051, 4294901760
    %v2395 = vsub.f32 %v2051, %v2394
    %v2396 = vand.u32 %v2395, 4294901760
    %v2397 = vsub.f32 %v2395, %v2396
    %v2398 = vand.u32 %v2397, 4294901760
    %2399 = vmatpush.msra.mxu0 %v2398
    %v2400 = vand.u32 %v2059, 4294901760
    %2401 = vmatmul.f32.gmra.mxu0 %v2400
    %v2402 = vpop.f32.mrf.mxu0
    %v2403 = vadd.f32 %v2377, %v2402
    %2404 = vdwg.mxu0
    %2405 = vmatpush.msra.mxu0 0.0
    %2406 = vmatpush.msra.mxu0 0.0
    %2407 = vmatpush.msra.mxu0 0.0
    %2408 = vmatpush.msra.mxu0 0.0
    %2409 = vmatpush.msra.mxu0 0.0
    %2410 = vmatpush.msra.mxu0 0.0
    %2411 = vmatpush.msra.mxu0 0.0
    %2412 = vmatpush.msra.mxu0 0.0
    %2413 = vmatpush.msra.mxu0 0.0
    %2414 = vmatpush.msra.mxu0 0.0
    %2415 = vmatpush.msra.mxu0 0.0
    %2416 = vmatpush.msra.mxu0 0.0
    %2417 = vmatpush.msra.mxu0 0.0
    %2418 = vmatpush.msra.mxu0 0.0
    %2419 = vmatpush.msra.mxu0 0.0
    %v2420 = vand.u32 %v2051, 4294901760
    %v2421 = vsub.f32 %v2051, %v2420
    %2422 = vmatpush.msra.mxu0 %v2421
    %v2423 = vand.u32 %v2059, 4294901760
    %v2424 = vsub.f32 %v2059, %v2423
    %2425 = vmatmul.f32.gmra.mxu0 %v2424
    %v2426 = vpop.f32.mrf.mxu0
    %v2427 = vadd.f32 %v2403, %v2426
    %2428 = vdwg.mxu0
    %2429 = vmatpush.msra.mxu0 0.0
    %2430 = vmatpush.msra.mxu0 0.0
    %2431 = vmatpush.msra.mxu0 0.0
    %2432 = vmatpush.msra.mxu0 0.0
    %2433 = vmatpush.msra.mxu0 0.0
    %2434 = vmatpush.msra.mxu0 0.0
    %2435 = vmatpush.msra.mxu0 0.0
    %2436 = vmatpush.msra.mxu0 0.0
    %2437 = vmatpush.msra.mxu0 0.0
    %2438 = vmatpush.msra.mxu0 0.0
    %2439 = vmatpush.msra.mxu0 0.0
    %2440 = vmatpush.msra.mxu0 0.0
    %2441 = vmatpush.msra.mxu0 0.0
    %2442 = vmatpush.msra.mxu0 0.0
    %2443 = vmatpush.msra.mxu0 0.0
    %v2444 = vand.u32 %v2051, 4294901760
    %2445 = vmatpush.msra.mxu0 %v2444
    %v2446 = vand.u32 %v2059, 4294901760
    %v2447 = vsub.f32 %v2059, %v2446
    %v2448 = vand.u32 %v2447, 4294901760
    %2449 = vmatmul.f32.gmra.mxu0 %v2448
    %v2450 = vpop.f32.mrf.mxu0
    %v2451 = vadd.f32 %v2427, %v2450
    %2452 = vdwg.mxu0
    %2453 = vmatpush.msra.mxu0 0.0
    %2454 = vmatpush.msra.mxu0 0.0
    %2455 = vmatpush.msra.mxu0 0.0
    %2456 = vmatpush.msra.mxu0 0.0
    %2457 = vmatpush.msra.mxu0 0.0
    %2458 = vmatpush.msra.mxu0 0.0
    %2459 = vmatpush.msra.mxu0 0.0
    %2460 = vmatpush.msra.mxu0 0.0
    %2461 = vmatpush.msra.mxu0 0.0
    %2462 = vmatpush.msra.mxu0 0.0
    %2463 = vmatpush.msra.mxu0 0.0
    %2464 = vmatpush.msra.mxu0 0.0
    %2465 = vmatpush.msra.mxu0 0.0
    %2466 = vmatpush.msra.mxu0 0.0
    %2467 = vmatpush.msra.mxu0 0.0
    %v2468 = vand.u32 %v2051, 4294901760
    %v2469 = vsub.f32 %v2051, %v2468
    %v2470 = vand.u32 %v2469, 4294901760
    %2471 = vmatpush.msra.mxu0 %v2470
    %v2472 = vand.u32 %v2059, 4294901760
    %2473 = vmatmul.f32.gmra.mxu0 %v2472
    %v2474 = vpop.f32.mrf.mxu0
    %v2475 = vadd.f32 %v2451, %v2474
    %2476 = vdwg.mxu0
    %2477 = vmatpush.msra.mxu0 0.0
    %2478 = vmatpush.msra.mxu0 0.0
    %2479 = vmatpush.msra.mxu0 0.0
    %2480 = vmatpush.msra.mxu0 0.0
    %2481 = vmatpush.msra.mxu0 0.0
    %2482 = vmatpush.msra.mxu0 0.0
    %2483 = vmatpush.msra.mxu0 0.0
    %2484 = vmatpush.msra.mxu0 0.0
    %2485 = vmatpush.msra.mxu0 0.0
    %2486 = vmatpush.msra.mxu0 0.0
    %2487 = vmatpush.msra.mxu0 0.0
    %2488 = vmatpush.msra.mxu0 0.0
    %2489 = vmatpush.msra.mxu0 0.0
    %2490 = vmatpush.msra.mxu0 0.0
    %2491 = vmatpush.msra.mxu0 0.0
    %v2492 = vand.u32 %v2051, 4294901760
    %2493 = vmatpush.msra.mxu0 %v2492
    %v2494 = vand.u32 %v2059, 4294901760
    %2495 = vmatmul.f32.gmra.mxu0 %v2494
    %v2496 = vpop.f32.mrf.mxu0
    %v2497 = vadd.f32 %v2475, %v2496
    %2498 = vdwg.mxu0
    %2499 = vmatpush.msra.mxu0 0.0
    %2500 = vmatpush.msra.mxu0 0.0
    %2501 = vmatpush.msra.mxu0 0.0
    %2502 = vmatpush.msra.mxu0 0.0
    %2503 = vmatpush.msra.mxu0 0.0
    %2504 = vmatpush.msra.mxu0 0.0
    %2505 = vmatpush.msra.mxu0 0.0
    %2506 = vmatpush.msra.mxu0 0.0
    %2507 = vmatpush.msra.mxu0 0.0
    %2508 = vmatpush.msra.mxu0 0.0
    %2509 = vmatpush.msra.mxu0 0.0
    %2510 = vmatpush.msra.mxu0 0.0
    %2511 = vmatpush.msra.mxu0 0.0
    %2512 = vmatpush.msra.mxu0 0.0
    %2513 = vmatpush.msra.mxu0 0.0
    %v2514 = vand.u32 %v2052, 4294901760
    %2515 = vmatpush.msra.mxu0 %v2514
    %v2516 = vand.u32 %v2059, 4294901760
    %v2517 = vsub.f32 %v2059, %v2516
    %v2518 = vand.u32 %v2517, 4294901760
    %v2519 = vsub.f32 %v2517, %v2518
    %v2520 = vand.u32 %v2519, 4294901760
    %2521 = vmatmul.f32.gmra.mxu0 %v2520
    %v2522 = vpop.f32.mrf.mxu0
    %v2523 = vadd.f32 0.0, %v2522
    %2524 = vdwg.mxu0
    %2525 = vmatpush.msra.mxu0 0.0
    %2526 = vmatpush.msra.mxu0 0.0
    %2527 = vmatpush.msra.mxu0 0.0
    %2528 = vmatpush.msra.mxu0 0.0
    %2529 = vmatpush.msra.mxu0 0.0
    %2530 = vmatpush.msra.mxu0 0.0
    %2531 = vmatpush.msra.mxu0 0.0
    %2532 = vmatpush.msra.mxu0 0.0
    %2533 = vmatpush.msra.mxu0 0.0
    %2534 = vmatpush.msra.mxu0 0.0
    %2535 = vmatpush.msra.mxu0 0.0
    %2536 = vmatpush.msra.mxu0 0.0
    %2537 = vmatpush.msra.mxu0 0.0
    %2538 = vmatpush.msra.mxu0 0.0
    %2539 = vmatpush.msra.mxu0 0.0
    %v2540 = vand.u32 %v2052, 4294901760
    %v2541 = vsub.f32 %v2052, %v2540
    %v2542 = vand.u32 %v2541, 4294901760
    %v2543 = vsub.f32 %v2541, %v2542
    %v2544 = vand.u32 %v2543, 4294901760
    %2545 = vmatpush.msra.mxu0 %v2544
    %v2546 = vand.u32 %v2059, 4294901760
    %2547 = vmatmul.f32.gmra.mxu0 %v2546
    %v2548 = vpop.f32.mrf.mxu0
    %v2549 = vadd.f32 %v2523, %v2548
    %2550 = vdwg.mxu0
    %2551 = vmatpush.msra.mxu0 0.0
    %2552 = vmatpush.msra.mxu0 0.0
    %2553 = vmatpush.msra.mxu0 0.0
    %2554 = vmatpush.msra.mxu0 0.0
    %2555 = vmatpush.msra.mxu0 0.0
    %2556 = vmatpush.msra.mxu0 0.0
    %2557 = vmatpush.msra.mxu0 0.0
    %2558 = vmatpush.msra.mxu0 0.0
    %2559 = vmatpush.msra.mxu0 0.0
    %2560 = vmatpush.msra.mxu0 0.0
    %2561 = vmatpush.msra.mxu0 0.0
    %2562 = vmatpush.msra.mxu0 0.0
    %2563 = vmatpush.msra.mxu0 0.0
    %2564 = vmatpush.msra.mxu0 0.0
    %2565 = vmatpush.msra.mxu0 0.0
    %v2566 = vand.u32 %v2052, 4294901760
    %v2567 = vsub.f32 %v2052, %v2566
    %2568 = vmatpush.msra.mxu0 %v2567
    %v2569 = vand.u32 %v2059, 4294901760
    %v2570 = vsub.f32 %v2059, %v2569
    %2571 = vmatmul.f32.gmra.mxu0 %v2570
    %v2572 = vpop.f32.mrf.mxu0
    %v2573 = vadd.f32 %v2549, %v2572
    %2574 = vdwg.mxu0
    %2575 = vmatpush.msra.mxu0 0.0
    %2576 = vmatpush.msra.mxu0 0.0
    %2577 = vmatpush.msra.mxu0 0.0
    %2578 = vmatpush.msra.mxu0 0.0
    %2579 = vmatpush.msra.mxu0 0.0
    %2580 = vmatpush.msra.mxu0 0.0
    %2581 = vmatpush.msra.mxu0 0.0
    %2582 = vmatpush.msra.mxu0 0.0
    %2583 = vmatpush.msra.mxu0 0.0
    %2584 = vmatpush.msra.mxu0 0.0
    %2585 = vmatpush.msra.mxu0 0.0
    %2586 = vmatpush.msra.mxu0 0.0
    %2587 = vmatpush.msra.mxu0 0.0
    %2588 = vmatpush.msra.mxu0 0.0
    %2589 = vmatpush.msra.mxu0 0.0
    %v2590 = vand.u32 %v2052, 4294901760
    %2591 = vmatpush.msra.mxu0 %v2590
    %v2592 = vand.u32 %v2059, 4294901760
    %v2593 = vsub.f32 %v2059, %v2592
    %v2594 = vand.u32 %v2593, 4294901760
    %2595 = vmatmul.f32.gmra.mxu0 %v2594
    %v2596 = vpop.f32.mrf.mxu0
    %v2597 = vadd.f32 %v2573, %v2596
    %2598 = vdwg.mxu0
    %2599 = vmatpush.msra.mxu0 0.0
    %2600 = vmatpush.msra.mxu0 0.0
    %2601 = vmatpush.msra.mxu0 0.0
    %2602 = vmatpush.msra.mxu0 0.0
    %2603 = vmatpush.msra.mxu0 0.0
    %2604 = vmatpush.msra.mxu0 0.0
    %2605 = vmatpush.msra.mxu0 0.0
    %2606 = vmatpush.msra.mxu0 0.0
    %2607 = vmatpush.msra.mxu0 0.0
    %2608 = vmatpush.msra.mxu0 0.0
    %2609 = vmatpush.msra.mxu0 0.0
    %2610 = vmatpush.msra.mxu0 0.0
    %2611 = vmatpush.msra.mxu0 0.0
    %2612 = vmatpush.msra.mxu0 0.0
    %2613 = vmatpush.msra.mxu0 0.0
    %v2614 = vand.u32 %v2052, 4294901760
    %v2615 = vsub.f32 %v2052, %v2614
    %v2616 = vand.u32 %v2615, 4294901760
    %2617 = vmatpush.msra.mxu0 %v2616
    %v2618 = vand.u32 %v2059, 4294901760
    %2619 = vmatmul.f32.gmra.mxu0 %v2618
    %v2620 = vpop.f32.mrf.mxu0
    %v2621 = vadd.f32 %v2597, %v2620
    %2622 = vdwg.mxu0
    %2623 = vmatpush.msra.mxu0 0.0
    %2624 = vmatpush.msra.mxu0 0.0
    %2625 = vmatpush.msra.mxu0 0.0
    %2626 = vmatpush.msra.mxu0 0.0
    %2627 = vmatpush.msra.mxu0 0.0
    %2628 = vmatpush.msra.mxu0 0.0
    %2629 = vmatpush.msra.mxu0 0.0
    %2630 = vmatpush.msra.mxu0 0.0
    %2631 = vmatpush.msra.mxu0 0.0
    %2632 = vmatpush.msra.mxu0 0.0
    %2633 = vmatpush.msra.mxu0 0.0
    %2634 = vmatpush.msra.mxu0 0.0
    %2635 = vmatpush.msra.mxu0 0.0
    %2636 = vmatpush.msra.mxu0 0.0
    %2637 = vmatpush.msra.mxu0 0.0
    %v2638 = vand.u32 %v2052, 4294901760
    %2639 = vmatpush.msra.mxu0 %v2638
    %v2640 = vand.u32 %v2059, 4294901760
    %2641 = vmatmul.f32.gmra.mxu0 %v2640
    %v2642 = vpop.f32.mrf.mxu0
    %v2643 = vadd.f32 %v2621, %v2642
    %2644 = vdwg.mxu0
    %2645 = vmatpush.msra.mxu0 0.0
    %2646 = vmatpush.msra.mxu0 0.0
    %2647 = vmatpush.msra.mxu0 0.0
    %2648 = vmatpush.msra.mxu0 0.0
    %2649 = vmatpush.msra.mxu0 0.0
    %2650 = vmatpush.msra.mxu0 0.0
    %2651 = vmatpush.msra.mxu0 0.0
    %2652 = vmatpush.msra.mxu0 0.0
    %2653 = vmatpush.msra.mxu0 0.0
    %2654 = vmatpush.msra.mxu0 0.0
    %2655 = vmatpush.msra.mxu0 0.0
    %2656 = vmatpush.msra.mxu0 0.0
    %2657 = vmatpush.msra.mxu0 0.0
    %2658 = vmatpush.msra.mxu0 0.0
    %2659 = vmatpush.msra.mxu0 0.0
    %v2660 = vand.u32 %v2053, 4294901760
    %2661 = vmatpush.msra.mxu0 %v2660
    %v2662 = vand.u32 %v2059, 4294901760
    %v2663 = vsub.f32 %v2059, %v2662
    %v2664 = vand.u32 %v2663, 4294901760
    %v2665 = vsub.f32 %v2663, %v2664
    %v2666 = vand.u32 %v2665, 4294901760
    %2667 = vmatmul.f32.gmra.mxu0 %v2666
    %v2668 = vpop.f32.mrf.mxu0
    %v2669 = vadd.f32 0.0, %v2668
    %2670 = vdwg.mxu0
    %2671 = vmatpush.msra.mxu0 0.0
    %2672 = vmatpush.msra.mxu0 0.0
    %2673 = vmatpush.msra.mxu0 0.0
    %2674 = vmatpush.msra.mxu0 0.0
    %2675 = vmatpush.msra.mxu0 0.0
    %2676 = vmatpush.msra.mxu0 0.0
    %2677 = vmatpush.msra.mxu0 0.0
    %2678 = vmatpush.msra.mxu0 0.0
    %2679 = vmatpush.msra.mxu0 0.0
    %2680 = vmatpush.msra.mxu0 0.0
    %2681 = vmatpush.msra.mxu0 0.0
    %2682 = vmatpush.msra.mxu0 0.0
    %2683 = vmatpush.msra.mxu0 0.0
    %2684 = vmatpush.msra.mxu0 0.0
    %2685 = vmatpush.msra.mxu0 0.0
    %v2686 = vand.u32 %v2053, 4294901760
    %v2687 = vsub.f32 %v2053, %v2686
    %v2688 = vand.u32 %v2687, 4294901760
    %v2689 = vsub.f32 %v2687, %v2688
    %v2690 = vand.u32 %v2689, 4294901760
    %2691 = vmatpush.msra.mxu0 %v2690
    %v2692 = vand.u32 %v2059, 4294901760
    %2693 = vmatmul.f32.gmra.mxu0 %v2692
    %v2694 = vpop.f32.mrf.mxu0
    %v2695 = vadd.f32 %v2669, %v2694
    %2696 = vdwg.mxu0
    %2697 = vmatpush.msra.mxu0 0.0
    %2698 = vmatpush.msra.mxu0 0.0
    %2699 = vmatpush.msra.mxu0 0.0
    %2700 = vmatpush.msra.mxu0 0.0
    %2701 = vmatpush.msra.mxu0 0.0
    %2702 = vmatpush.msra.mxu0 0.0
    %2703 = vmatpush.msra.mxu0 0.0
    %2704 = vmatpush.msra.mxu0 0.0
    %2705 = vmatpush.msra.mxu0 0.0
    %2706 = vmatpush.msra.mxu0 0.0
    %2707 = vmatpush.msra.mxu0 0.0
    %2708 = vmatpush.msra.mxu0 0.0
    %2709 = vmatpush.msra.mxu0 0.0
    %2710 = vmatpush.msra.mxu0 0.0
    %2711 = vmatpush.msra.mxu0 0.0
    %v2712 = vand.u32 %v2053, 4294901760
    %v2713 = vsub.f32 %v2053, %v2712
    %2714 = vmatpush.msra.mxu0 %v2713
    %v2715 = vand.u32 %v2059, 4294901760
    %v2716 = vsub.f32 %v2059, %v2715
    %2717 = vmatmul.f32.gmra.mxu0 %v2716
    %v2718 = vpop.f32.mrf.mxu0
    %v2719 = vadd.f32 %v2695, %v2718
    %2720 = vdwg.mxu0
    %2721 = vmatpush.msra.mxu0 0.0
    %2722 = vmatpush.msra.mxu0 0.0
    %2723 = vmatpush.msra.mxu0 0.0
    %2724 = vmatpush.msra.mxu0 0.0
    %2725 = vmatpush.msra.mxu0 0.0
    %2726 = vmatpush.msra.mxu0 0.0
    %2727 = vmatpush.msra.mxu0 0.0
    %2728 = vmatpush.msra.mxu0 0.0
    %2729 = vmatpush.msra.mxu0 0.0
    %2730 = vmatpush.msra.mxu0 0.0
    %2731 = vmatpush.msra.mxu0 0.0
    %2732 = vmatpush.msra.mxu0 0.0
    %2733 = vmatpush.msra.mxu0 0.0
    %2734 = vmatpush.msra.mxu0 0.0
    %2735 = vmatpush.msra.mxu0 0.0
    %v2736 = vand.u32 %v2053, 4294901760
    %2737 = vmatpush.msra.mxu0 %v2736
    %v2738 = vand.u32 %v2059, 4294901760
    %v2739 = vsub.f32 %v2059, %v2738
    %v2740 = vand.u32 %v2739, 4294901760
    %2741 = vmatmul.f32.gmra.mxu0 %v2740
    %v2742 = vpop.f32.mrf.mxu0
    %v2743 = vadd.f32 %v2719, %v2742
    %2744 = vdwg.mxu0
    %2745 = vmatpush.msra.mxu0 0.0
    %2746 = vmatpush.msra.mxu0 0.0
    %2747 = vmatpush.msra.mxu0 0.0
    %2748 = vmatpush.msra.mxu0 0.0
    %2749 = vmatpush.msra.mxu0 0.0
    %2750 = vmatpush.msra.mxu0 0.0
    %2751 = vmatpush.msra.mxu0 0.0
    %2752 = vmatpush.msra.mxu0 0.0
    %2753 = vmatpush.msra.mxu0 0.0
    %2754 = vmatpush.msra.mxu0 0.0
    %2755 = vmatpush.msra.mxu0 0.0
    %2756 = vmatpush.msra.mxu0 0.0
    %2757 = vmatpush.msra.mxu0 0.0
    %2758 = vmatpush.msra.mxu0 0.0
    %2759 = vmatpush.msra.mxu0 0.0
    %v2760 = vand.u32 %v2053, 4294901760
    %v2761 = vsub.f32 %v2053, %v2760
    %v2762 = vand.u32 %v2761, 4294901760
    %2763 = vmatpush.msra.mxu0 %v2762
    %v2764 = vand.u32 %v2059, 4294901760
    %2765 = vmatmul.f32.gmra.mxu0 %v2764
    %v2766 = vpop.f32.mrf.mxu0
    %v2767 = vadd.f32 %v2743, %v2766
    %2768 = vdwg.mxu0
    %2769 = vmatpush.msra.mxu0 0.0
    %2770 = vmatpush.msra.mxu0 0.0
    %2771 = vmatpush.msra.mxu0 0.0
    %2772 = vmatpush.msra.mxu0 0.0
    %2773 = vmatpush.msra.mxu0 0.0
    %2774 = vmatpush.msra.mxu0 0.0
    %2775 = vmatpush.msra.mxu0 0.0
    %2776 = vmatpush.msra.mxu0 0.0
    %2777 = vmatpush.msra.mxu0 0.0
    %2778 = vmatpush.msra.mxu0 0.0
    %2779 = vmatpush.msra.mxu0 0.0
    %2780 = vmatpush.msra.mxu0 0.0
    %2781 = vmatpush.msra.mxu0 0.0
    %2782 = vmatpush.msra.mxu0 0.0
    %2783 = vmatpush.msra.mxu0 0.0
    %v2784 = vand.u32 %v2053, 4294901760
    %2785 = vmatpush.msra.mxu0 %v2784
    %v2786 = vand.u32 %v2059, 4294901760
    %2787 = vmatmul.f32.gmra.mxu0 %v2786
    %v2788 = vpop.f32.mrf.mxu0
    %v2789 = vadd.f32 %v2767, %v2788
    %2790 = vdwg.mxu0
    %2791 = vmatpush.msra.mxu0 0.0
    %2792 = vmatpush.msra.mxu0 0.0
    %2793 = vmatpush.msra.mxu0 0.0
    %2794 = vmatpush.msra.mxu0 0.0
    %2795 = vmatpush.msra.mxu0 0.0
    %2796 = vmatpush.msra.mxu0 0.0
    %2797 = vmatpush.msra.mxu0 0.0
    %2798 = vmatpush.msra.mxu0 0.0
    %2799 = vmatpush.msra.mxu0 0.0
    %2800 = vmatpush.msra.mxu0 0.0
    %2801 = vmatpush.msra.mxu0 0.0
    %2802 = vmatpush.msra.mxu0 0.0
    %2803 = vmatpush.msra.mxu0 0.0
    %2804 = vmatpush.msra.mxu0 0.0
    %2805 = vmatpush.msra.mxu0 0.0
    %v2806 = vand.u32 %v2054, 4294901760
    %2807 = vmatpush.msra.mxu0 %v2806
    %v2808 = vand.u32 %v2059, 4294901760
    %v2809 = vsub.f32 %v2059, %v2808
    %v2810 = vand.u32 %v2809, 4294901760
    %v2811 = vsub.f32 %v2809, %v2810
    %v2812 = vand.u32 %v2811, 4294901760
    %2813 = vmatmul.f32.gmra.mxu0 %v2812
    %v2814 = vpop.f32.mrf.mxu0
    %v2815 = vadd.f32 0.0, %v2814
    %2816 = vdwg.mxu0
    %2817 = vmatpush.msra.mxu0 0.0
    %2818 = vmatpush.msra.mxu0 0.0
    %2819 = vmatpush.msra.mxu0 0.0
    %2820 = vmatpush.msra.mxu0 0.0
    %2821 = vmatpush.msra.mxu0 0.0
    %2822 = vmatpush.msra.mxu0 0.0
    %2823 = vmatpush.msra.mxu0 0.0
    %2824 = vmatpush.msra.mxu0 0.0
    %2825 = vmatpush.msra.mxu0 0.0
    %2826 = vmatpush.msra.mxu0 0.0
    %2827 = vmatpush.msra.mxu0 0.0
    %2828 = vmatpush.msra.mxu0 0.0
    %2829 = vmatpush.msra.mxu0 0.0
    %2830 = vmatpush.msra.mxu0 0.0
    %2831 = vmatpush.msra.mxu0 0.0
    %v2832 = vand.u32 %v2054, 4294901760
    %v2833 = vsub.f32 %v2054, %v2832
    %v2834 = vand.u32 %v2833, 4294901760
    %v2835 = vsub.f32 %v2833, %v2834
    %v2836 = vand.u32 %v2835, 4294901760
    %2837 = vmatpush.msra.mxu0 %v2836
    %v2838 = vand.u32 %v2059, 4294901760
    %2839 = vmatmul.f32.gmra.mxu0 %v2838
    %v2840 = vpop.f32.mrf.mxu0
    %v2841 = vadd.f32 %v2815, %v2840
    %2842 = vdwg.mxu0
    %2843 = vmatpush.msra.mxu0 0.0
    %2844 = vmatpush.msra.mxu0 0.0
    %2845 = vmatpush.msra.mxu0 0.0
    %2846 = vmatpush.msra.mxu0 0.0
    %2847 = vmatpush.msra.mxu0 0.0
    %2848 = vmatpush.msra.mxu0 0.0
    %2849 = vmatpush.msra.mxu0 0.0
    %2850 = vmatpush.msra.mxu0 0.0
    %2851 = vmatpush.msra.mxu0 0.0
    %2852 = vmatpush.msra.mxu0 0.0
    %2853 = vmatpush.msra.mxu0 0.0
    %2854 = vmatpush.msra.mxu0 0.0
    %2855 = vmatpush.msra.mxu0 0.0
    %2856 = vmatpush.msra.mxu0 0.0
    %2857 = vmatpush.msra.mxu0 0.0
    %v2858 = vand.u32 %v2054, 4294901760
    %v2859 = vsub.f32 %v2054, %v2858
    %2860 = vmatpush.msra.mxu0 %v2859
    %v2861 = vand.u32 %v2059, 4294901760
    %v2862 = vsub.f32 %v2059, %v2861
    %2863 = vmatmul.f32.gmra.mxu0 %v2862
    %v2864 = vpop.f32.mrf.mxu0
    %v2865 = vadd.f32 %v2841, %v2864
    %2866 = vdwg.mxu0
    %2867 = vmatpush.msra.mxu0 0.0
    %2868 = vmatpush.msra.mxu0 0.0
    %2869 = vmatpush.msra.mxu0 0.0
    %2870 = vmatpush.msra.mxu0 0.0
    %2871 = vmatpush.msra.mxu0 0.0
    %2872 = vmatpush.msra.mxu0 0.0
    %2873 = vmatpush.msra.mxu0 0.0
    %2874 = vmatpush.msra.mxu0 0.0
    %2875 = vmatpush.msra.mxu0 0.0
    %2876 = vmatpush.msra.mxu0 0.0
    %2877 = vmatpush.msra.mxu0 0.0
    %2878 = vmatpush.msra.mxu0 0.0
    %2879 = vmatpush.msra.mxu0 0.0
    %2880 = vmatpush.msra.mxu0 0.0
    %2881 = vmatpush.msra.mxu0 0.0
    %v2882 = vand.u32 %v2054, 4294901760
    %2883 = vmatpush.msra.mxu0 %v2882
    %v2884 = vand.u32 %v2059, 4294901760
    %v2885 = vsub.f32 %v2059, %v2884
    %v2886 = vand.u32 %v2885, 4294901760
    %2887 = vmatmul.f32.gmra.mxu0 %v2886
    %v2888 = vpop.f32.mrf.mxu0
    %v2889 = vadd.f32 %v2865, %v2888
    %2890 = vdwg.mxu0
    %2891 = vmatpush.msra.mxu0 0.0
    %2892 = vmatpush.msra.mxu0 0.0
    %2893 = vmatpush.msra.mxu0 0.0
    %2894 = vmatpush.msra.mxu0 0.0
    %2895 = vmatpush.msra.mxu0 0.0
    %2896 = vmatpush.msra.mxu0 0.0
    %2897 = vmatpush.msra.mxu0 0.0
    %2898 = vmatpush.msra.mxu0 0.0
    %2899 = vmatpush.msra.mxu0 0.0
    %2900 = vmatpush.msra.mxu0 0.0
    %2901 = vmatpush.msra.mxu0 0.0
    %2902 = vmatpush.msra.mxu0 0.0
    %2903 = vmatpush.msra.mxu0 0.0
    %2904 = vmatpush.msra.mxu0 0.0
    %2905 = vmatpush.msra.mxu0 0.0
    %v2906 = vand.u32 %v2054, 4294901760
    %v2907 = vsub.f32 %v2054, %v2906
    %v2908 = vand.u32 %v2907, 4294901760
    %2909 = vmatpush.msra.mxu0 %v2908
    %v2910 = vand.u32 %v2059, 4294901760
    %2911 = vmatmul.f32.gmra.mxu0 %v2910
    %v2912 = vpop.f32.mrf.mxu0
    %v2913 = vadd.f32 %v2889, %v2912
    %2914 = vdwg.mxu0
    %2915 = vmatpush.msra.mxu0 0.0
    %2916 = vmatpush.msra.mxu0 0.0
    %2917 = vmatpush.msra.mxu0 0.0
    %2918 = vmatpush.msra.mxu0 0.0
    %2919 = vmatpush.msra.mxu0 0.0
    %2920 = vmatpush.msra.mxu0 0.0
    %2921 = vmatpush.msra.mxu0 0.0
    %2922 = vmatpush.msra.mxu0 0.0
    %2923 = vmatpush.msra.mxu0 0.0
    %2924 = vmatpush.msra.mxu0 0.0
    %2925 = vmatpush.msra.mxu0 0.0
    %2926 = vmatpush.msra.mxu0 0.0
    %2927 = vmatpush.msra.mxu0 0.0
    %2928 = vmatpush.msra.mxu0 0.0
    %2929 = vmatpush.msra.mxu0 0.0
    %v2930 = vand.u32 %v2054, 4294901760
    %2931 = vmatpush.msra.mxu0 %v2930
    %v2932 = vand.u32 %v2059, 4294901760
    %2933 = vmatmul.f32.gmra.mxu0 %v2932
    %v2934 = vpop.f32.mrf.mxu0
    %v2935 = vadd.f32 %v2913, %v2934
    %2936 = vdwg.mxu0
    %2937 = vmatpush.msra.mxu0 0.0
    %2938 = vmatpush.msra.mxu0 0.0
    %2939 = vmatpush.msra.mxu0 0.0
    %2940 = vmatpush.msra.mxu0 0.0
    %2941 = vmatpush.msra.mxu0 0.0
    %2942 = vmatpush.msra.mxu0 0.0
    %2943 = vmatpush.msra.mxu0 0.0
    %2944 = vmatpush.msra.mxu0 0.0
    %2945 = vmatpush.msra.mxu0 0.0
    %2946 = vmatpush.msra.mxu0 0.0
    %2947 = vmatpush.msra.mxu0 0.0
    %2948 = vmatpush.msra.mxu0 0.0
    %2949 = vmatpush.msra.mxu0 0.0
    %2950 = vmatpush.msra.mxu0 0.0
    %2951 = vmatpush.msra.mxu0 0.0
    %v2952 = vand.u32 %v2055, 4294901760
    %2953 = vmatpush.msra.mxu0 %v2952
    %v2954 = vand.u32 %v2059, 4294901760
    %v2955 = vsub.f32 %v2059, %v2954
    %v2956 = vand.u32 %v2955, 4294901760
    %v2957 = vsub.f32 %v2955, %v2956
    %v2958 = vand.u32 %v2957, 4294901760
    %2959 = vmatmul.f32.gmra.mxu0 %v2958
    %v2960 = vpop.f32.mrf.mxu0
    %v2961 = vadd.f32 0.0, %v2960
    %2962 = vdwg.mxu0
    %2963 = vmatpush.msra.mxu0 0.0
    %2964 = vmatpush.msra.mxu0 0.0
    %2965 = vmatpush.msra.mxu0 0.0
    %2966 = vmatpush.msra.mxu0 0.0
    %2967 = vmatpush.msra.mxu0 0.0
    %2968 = vmatpush.msra.mxu0 0.0
    %2969 = vmatpush.msra.mxu0 0.0
    %2970 = vmatpush.msra.mxu0 0.0
    %2971 = vmatpush.msra.mxu0 0.0
    %2972 = vmatpush.msra.mxu0 0.0
    %2973 = vmatpush.msra.mxu0 0.0
    %2974 = vmatpush.msra.mxu0 0.0
    %2975 = vmatpush.msra.mxu0 0.0
    %2976 = vmatpush.msra.mxu0 0.0
    %2977 = vmatpush.msra.mxu0 0.0
    %v2978 = vand.u32 %v2055, 4294901760
    %v2979 = vsub.f32 %v2055, %v2978
    %v2980 = vand.u32 %v2979, 4294901760
    %v2981 = vsub.f32 %v2979, %v2980
    %v2982 = vand.u32 %v2981, 4294901760
    %2983 = vmatpush.msra.mxu0 %v2982
    %v2984 = vand.u32 %v2059, 4294901760
    %2985 = vmatmul.f32.gmra.mxu0 %v2984
    %v2986 = vpop.f32.mrf.mxu0
    %v2987 = vadd.f32 %v2961, %v2986
    %2988 = vdwg.mxu0
    %2989 = vmatpush.msra.mxu0 0.0
    %2990 = vmatpush.msra.mxu0 0.0
    %2991 = vmatpush.msra.mxu0 0.0
    %2992 = vmatpush.msra.mxu0 0.0
    %2993 = vmatpush.msra.mxu0 0.0
    %2994 = vmatpush.msra.mxu0 0.0
    %2995 = vmatpush.msra.mxu0 0.0
    %2996 = vmatpush.msra.mxu0 0.0
    %2997 = vmatpush.msra.mxu0 0.0
    %2998 = vmatpush.msra.mxu0 0.0
    %2999 = vmatpush.msra.mxu0 0.0
    %3000 = vmatpush.msra.mxu0 0.0
    %3001 = vmatpush.msra.mxu0 0.0
    %3002 = vmatpush.msra.mxu0 0.0
    %3003 = vmatpush.msra.mxu0 0.0
    %v3004 = vand.u32 %v2055, 4294901760
    %v3005 = vsub.f32 %v2055, %v3004
    %3006 = vmatpush.msra.mxu0 %v3005
    %v3007 = vand.u32 %v2059, 4294901760
    %v3008 = vsub.f32 %v2059, %v3007
    %3009 = vmatmul.f32.gmra.mxu0 %v3008
    %v3010 = vpop.f32.mrf.mxu0
    %v3011 = vadd.f32 %v2987, %v3010
    %3012 = vdwg.mxu0
    %3013 = vmatpush.msra.mxu0 0.0
    %3014 = vmatpush.msra.mxu0 0.0
    %3015 = vmatpush.msra.mxu0 0.0
    %3016 = vmatpush.msra.mxu0 0.0
    %3017 = vmatpush.msra.mxu0 0.0
    %3018 = vmatpush.msra.mxu0 0.0
    %3019 = vmatpush.msra.mxu0 0.0
    %3020 = vmatpush.msra.mxu0 0.0
    %3021 = vmatpush.msra.mxu0 0.0
    %3022 = vmatpush.msra.mxu0 0.0
    %3023 = vmatpush.msra.mxu0 0.0
    %3024 = vmatpush.msra.mxu0 0.0
    %3025 = vmatpush.msra.mxu0 0.0
    %3026 = vmatpush.msra.mxu0 0.0
    %3027 = vmatpush.msra.mxu0 0.0
    %v3028 = vand.u32 %v2055, 4294901760
    %3029 = vmatpush.msra.mxu0 %v3028
    %v3030 = vand.u32 %v2059, 4294901760
    %v3031 = vsub.f32 %v2059, %v3030
    %v3032 = vand.u32 %v3031, 4294901760
    %3033 = vmatmul.f32.gmra.mxu0 %v3032
    %v3034 = vpop.f32.mrf.mxu0
    %v3035 = vadd.f32 %v3011, %v3034
    %3036 = vdwg.mxu0
    %3037 = vmatpush.msra.mxu0 0.0
    %3038 = vmatpush.msra.mxu0 0.0
    %3039 = vmatpush.msra.mxu0 0.0
    %3040 = vmatpush.msra.mxu0 0.0
    %3041 = vmatpush.msra.mxu0 0.0
    %3042 = vmatpush.msra.mxu0 0.0
    %3043 = vmatpush.msra.mxu0 0.0
    %3044 = vmatpush.msra.mxu0 0.0
    %3045 = vmatpush.msra.mxu0 0.0
    %3046 = vmatpush.msra.mxu0 0.0
    %3047 = vmatpush.msra.mxu0 0.0
    %3048 = vmatpush.msra.mxu0 0.0
    %3049 = vmatpush.msra.mxu0 0.0
    %3050 = vmatpush.msra.mxu0 0.0
    %3051 = vmatpush.msra.mxu0 0.0
    %v3052 = vand.u32 %v2055, 4294901760
    %v3053 = vsub.f32 %v2055, %v3052
    %v3054 = vand.u32 %v3053, 4294901760
    %3055 = vmatpush.msra.mxu0 %v3054
    %v3056 = vand.u32 %v2059, 4294901760
    %3057 = vmatmul.f32.gmra.mxu0 %v3056
    %v3058 = vpop.f32.mrf.mxu0
    %v3059 = vadd.f32 %v3035, %v3058
    %3060 = vdwg.mxu0
    %3061 = vmatpush.msra.mxu0 0.0
    %3062 = vmatpush.msra.mxu0 0.0
    %3063 = vmatpush.msra.mxu0 0.0
    %3064 = vmatpush.msra.mxu0 0.0
    %3065 = vmatpush.msra.mxu0 0.0
    %3066 = vmatpush.msra.mxu0 0.0
    %3067 = vmatpush.msra.mxu0 0.0
    %3068 = vmatpush.msra.mxu0 0.0
    %3069 = vmatpush.msra.mxu0 0.0
    %3070 = vmatpush.msra.mxu0 0.0
    %3071 = vmatpush.msra.mxu0 0.0
    %3072 = vmatpush.msra.mxu0 0.0
    %3073 = vmatpush.msra.mxu0 0.0
    %3074 = vmatpush.msra.mxu0 0.0
    %3075 = vmatpush.msra.mxu0 0.0
    %v3076 = vand.u32 %v2055, 4294901760
    %3077 = vmatpush.msra.mxu0 %v3076
    %v3078 = vand.u32 %v2059, 4294901760
    %3079 = vmatmul.f32.gmra.mxu0 %v3078
    %v3080 = vpop.f32.mrf.mxu0
    %v3081 = vadd.f32 %v3059, %v3080
    %3082 = vdwg.mxu0
    %3083 = vmatpush.msra.mxu0 0.0
    %3084 = vmatpush.msra.mxu0 0.0
    %3085 = vmatpush.msra.mxu0 0.0
    %3086 = vmatpush.msra.mxu0 0.0
    %3087 = vmatpush.msra.mxu0 0.0
    %3088 = vmatpush.msra.mxu0 0.0
    %3089 = vmatpush.msra.mxu0 0.0
    %3090 = vmatpush.msra.mxu0 0.0
    %3091 = vmatpush.msra.mxu0 0.0
    %3092 = vmatpush.msra.mxu0 0.0
    %3093 = vmatpush.msra.mxu0 0.0
    %3094 = vmatpush.msra.mxu0 0.0
    %3095 = vmatpush.msra.mxu0 0.0
    %3096 = vmatpush.msra.mxu0 0.0
    %3097 = vmatpush.msra.mxu0 0.0
    %v3098 = vand.u32 %v2056, 4294901760
    %3099 = vmatpush.msra.mxu0 %v3098
    %v3100 = vand.u32 %v2059, 4294901760
    %v3101 = vsub.f32 %v2059, %v3100
    %v3102 = vand.u32 %v3101, 4294901760
    %v3103 = vsub.f32 %v3101, %v3102
    %v3104 = vand.u32 %v3103, 4294901760
    %3105 = vmatmul.f32.gmra.mxu0 %v3104
    %v3106 = vpop.f32.mrf.mxu0
    %v3107 = vadd.f32 0.0, %v3106
    %3108 = vdwg.mxu0
    %3109 = vmatpush.msra.mxu0 0.0
    %3110 = vmatpush.msra.mxu0 0.0
    %3111 = vmatpush.msra.mxu0 0.0
    %3112 = vmatpush.msra.mxu0 0.0
    %3113 = vmatpush.msra.mxu0 0.0
    %3114 = vmatpush.msra.mxu0 0.0
    %3115 = vmatpush.msra.mxu0 0.0
    %3116 = vmatpush.msra.mxu0 0.0
    %3117 = vmatpush.msra.mxu0 0.0
    %3118 = vmatpush.msra.mxu0 0.0
    %3119 = vmatpush.msra.mxu0 0.0
    %3120 = vmatpush.msra.mxu0 0.0
    %3121 = vmatpush.msra.mxu0 0.0
    %3122 = vmatpush.msra.mxu0 0.0
    %3123 = vmatpush.msra.mxu0 0.0
    %v3124 = vand.u32 %v2056, 4294901760
    %v3125 = vsub.f32 %v2056, %v3124
    %v3126 = vand.u32 %v3125, 4294901760
    %v3127 = vsub.f32 %v3125, %v3126
    %v3128 = vand.u32 %v3127, 4294901760
    %3129 = vmatpush.msra.mxu0 %v3128
    %v3130 = vand.u32 %v2059, 4294901760
    %3131 = vmatmul.f32.gmra.mxu0 %v3130
    %v3132 = vpop.f32.mrf.mxu0
    %v3133 = vadd.f32 %v3107, %v3132
    %3134 = vdwg.mxu0
    %3135 = vmatpush.msra.mxu0 0.0
    %3136 = vmatpush.msra.mxu0 0.0
    %3137 = vmatpush.msra.mxu0 0.0
    %3138 = vmatpush.msra.mxu0 0.0
    %3139 = vmatpush.msra.mxu0 0.0
    %3140 = vmatpush.msra.mxu0 0.0
    %3141 = vmatpush.msra.mxu0 0.0
    %3142 = vmatpush.msra.mxu0 0.0
    %3143 = vmatpush.msra.mxu0 0.0
    %3144 = vmatpush.msra.mxu0 0.0
    %3145 = vmatpush.msra.mxu0 0.0
    %3146 = vmatpush.msra.mxu0 0.0
    %3147 = vmatpush.msra.mxu0 0.0
    %3148 = vmatpush.msra.mxu0 0.0
    %3149 = vmatpush.msra.mxu0 0.0
    %v3150 = vand.u32 %v2056, 4294901760
    %v3151 = vsub.f32 %v2056, %v3150
    %3152 = vmatpush.msra.mxu0 %v3151
    %v3153 = vand.u32 %v2059, 4294901760
    %v3154 = vsub.f32 %v2059, %v3153
    %3155 = vmatmul.f32.gmra.mxu0 %v3154
    %v3156 = vpop.f32.mrf.mxu0
    %v3157 = vadd.f32 %v3133, %v3156
    %3158 = vdwg.mxu0
    %3159 = vmatpush.msra.mxu0 0.0
    %3160 = vmatpush.msra.mxu0 0.0
    %3161 = vmatpush.msra.mxu0 0.0
    %3162 = vmatpush.msra.mxu0 0.0
    %3163 = vmatpush.msra.mxu0 0.0
    %3164 = vmatpush.msra.mxu0 0.0
    %3165 = vmatpush.msra.mxu0 0.0
    %3166 = vmatpush.msra.mxu0 0.0
    %3167 = vmatpush.msra.mxu0 0.0
    %3168 = vmatpush.msra.mxu0 0.0
    %3169 = vmatpush.msra.mxu0 0.0
    %3170 = vmatpush.msra.mxu0 0.0
    %3171 = vmatpush.msra.mxu0 0.0
    %3172 = vmatpush.msra.mxu0 0.0
    %3173 = vmatpush.msra.mxu0 0.0
    %v3174 = vand.u32 %v2056, 4294901760
    %3175 = vmatpush.msra.mxu0 %v3174
    %v3176 = vand.u32 %v2059, 4294901760
    %v3177 = vsub.f32 %v2059, %v3176
    %v3178 = vand.u32 %v3177, 4294901760
    %3179 = vmatmul.f32.gmra.mxu0 %v3178
    %v3180 = vpop.f32.mrf.mxu0
    %v3181 = vadd.f32 %v3157, %v3180
    %3182 = vdwg.mxu0
    %3183 = vmatpush.msra.mxu0 0.0
    %3184 = vmatpush.msra.mxu0 0.0
    %3185 = vmatpush.msra.mxu0 0.0
    %3186 = vmatpush.msra.mxu0 0.0
    %3187 = vmatpush.msra.mxu0 0.0
    %3188 = vmatpush.msra.mxu0 0.0
    %3189 = vmatpush.msra.mxu0 0.0
    %3190 = vmatpush.msra.mxu0 0.0
    %3191 = vmatpush.msra.mxu0 0.0
    %3192 = vmatpush.msra.mxu0 0.0
    %3193 = vmatpush.msra.mxu0 0.0
    %3194 = vmatpush.msra.mxu0 0.0
    %3195 = vmatpush.msra.mxu0 0.0
    %3196 = vmatpush.msra.mxu0 0.0
    %3197 = vmatpush.msra.mxu0 0.0
    %v3198 = vand.u32 %v2056, 4294901760
    %v3199 = vsub.f32 %v2056, %v3198
    %v3200 = vand.u32 %v3199, 4294901760
    %3201 = vmatpush.msra.mxu0 %v3200
    %v3202 = vand.u32 %v2059, 4294901760
    %3203 = vmatmul.f32.gmra.mxu0 %v3202
    %v3204 = vpop.f32.mrf.mxu0
    %v3205 = vadd.f32 %v3181, %v3204
    %3206 = vdwg.mxu0
    %3207 = vmatpush.msra.mxu0 0.0
    %3208 = vmatpush.msra.mxu0 0.0
    %3209 = vmatpush.msra.mxu0 0.0
    %3210 = vmatpush.msra.mxu0 0.0
    %3211 = vmatpush.msra.mxu0 0.0
    %3212 = vmatpush.msra.mxu0 0.0
    %3213 = vmatpush.msra.mxu0 0.0
    %3214 = vmatpush.msra.mxu0 0.0
    %3215 = vmatpush.msra.mxu0 0.0
    %3216 = vmatpush.msra.mxu0 0.0
    %3217 = vmatpush.msra.mxu0 0.0
    %3218 = vmatpush.msra.mxu0 0.0
    %3219 = vmatpush.msra.mxu0 0.0
    %3220 = vmatpush.msra.mxu0 0.0
    %3221 = vmatpush.msra.mxu0 0.0
    %v3222 = vand.u32 %v2056, 4294901760
    %3223 = vmatpush.msra.mxu0 %v3222
    %v3224 = vand.u32 %v2059, 4294901760
    %3225 = vmatmul.f32.gmra.mxu0 %v3224
    %v3226 = vpop.f32.mrf.mxu0
    %v3227 = vadd.f32 %v3205, %v3226
    %3228 = vdwg.mxu0
    %v3229 = vmul.f32 %v2040, %v2205
    %v3230 = vmul.f32 %v2041, %v2351
    %v3231 = vmul.f32 %v2042, %v2497
    %v3232 = vmul.f32 %v2043, %v2643
    %v3233 = vmul.f32 %v2044, %v2789
    %v3234 = vmul.f32 %v2045, %v2935
    %v3235 = vmul.f32 %v2046, %v3081
    %v3236 = vmul.f32 %v2047, %v3227
    %3237 = vst [vmem:[#allocation10] sm:$0xff] %v3229
    %3238 = vst [vmem:[#allocation10 + $0x8] sm:$0xff] %v3230
    %3239 = vst [vmem:[#allocation10 + $0x10] sm:$0xff] %v3231
    %3240 = vst [vmem:[#allocation10 + $0x18] sm:$0xff] %v3232
    %3241 = vst [vmem:[#allocation10 + $0x20] sm:$0xff] %v3233
    %3242 = vst [vmem:[#allocation10 + $0x28] sm:$0xff] %v3234
    %3243 = vst [vmem:[#allocation10 + $0x30] sm:$0xff] %v3235
    %3244 = vst [vmem:[#allocation10 + $0x38] sm:$0xff] %v3236
    // Predicated region
    $region34: #{tpu_custom_call.1} parent=1 // pred_check
      _
    $region35: #{tpu_custom_call.1} parent=1 // pred_check_branch
      %3246 = sbr.rel (0) target = $region37
    $region36: #{tpu_custom_call.1} parent=1 // pred_region
      %3248 = vsyncadd [#allocation4], 0
      %s3250 = sshll.u32 [#allocation10], 4
      %s3251 = int_to_ptr.vmem [resolvable:$true] %s3250
      %s3252 = sshll.u32 %s4, 4
      %s3253 = int_to_ptr.hbm [resolvable:$true] %s3252
      %3255 = dma.vmem_to_hbm [thread:$0]  %s3251, 1024, %s3253, [#allocation4]
    $region37: #{tpu_custom_call.1} parent=1 // pred_fallthru
      _
    // Predicated region
    $region38: #{tpu_custom_call.1} parent=1 // pred_check
      _
    $region39: #{tpu_custom_call.1} parent=1 // pred_check_branch
      %3257 = sbr.rel (0) target = $region41
    $region40: #{tpu_custom_call.1} parent=1 // pred_region
      %3259 = dma.done [#allocation4], 1024
    $region41: #{tpu_custom_call.1} parent=1 // pred_fallthru
      _
    %3260 = vsyncpa [#allocation3], 1
    %3261 = vsyncpa [#allocation6], 1
    %3262 = vsyncpa [#allocation9], 1
    %3263 = vsyncpa [#allocation4], 1

</llo_original>
